<compile_context>
chip_gen: v7x
topology: tpu7x:2x2x1
jax: 0.10.0
libtpu: 0.0.40
codegen_flags: <defaults>
</compile_context>

<pallas_src>
import functools

import jax
import jax.numpy as jnp
import numpy as np
from jax.experimental import pallas as pl
from jax.experimental.pallas import tpu as pltpu

_NPAD = 128  # lane-dense fc/output width; only the first 3 columns are real


def _sigmoid(z):
    # sigmoid via tanh: a single EUP push instead of exp + divide on the VPU.
    return 0.5 * jnp.tanh(0.5 * z) + 0.5


def tracklet_kernel(x_ref, wih_ref, whh_ref, b_ref, wfc_ref, bfc_ref, m_ref,
                    o_ref, xw_ref, hs_ref):
    """Per-batch-tile LSTM recurrence + deferred fc + per-photo mean pooling.

    x_ref   : (Bt, T, D)      input tile (batch-major, natural layout)
    wih_ref : (D, 4H)         input->gates weight (pre-transposed, order i,f,g,o)
    whh_ref : (H, 4H)         hidden->gates weight (pre-transposed)
    b_ref   : (1, 4H)         b_ih + b_hh
    wfc_ref : (H, NPAD)       final linear weight, zero-padded to 128 lanes
    bfc_ref : (1, NPAD)       final linear bias, zero-padded
    m_ref   : (Bt, P, T)      per-batch scaled one-hot pooling (1/count folded in)
    o_ref   : (Bt, P, NPAD)   per-photo means (columns >= 3 are zero)
    xw_ref  : (Bt, T, 4H)     VMEM scratch: staged input projection
    hs_ref  : (Bt, T, H)      VMEM scratch: all hidden states
    """
    Bt, T, D = x_ref.shape
    H = whh_ref.shape[0]
    G = 4 * H
    NPAD = wfc_ref.shape[1]

    # ---- batched input projection, staged through VMEM scratch -------------
    # One well-shaped MXU matmul for all timesteps when the (Bt,T,D)->(Bt*T,D)
    # reshape is sublane-aligned (T % 8 == 0); otherwise per-step matmuls.
    if T % 8 == 0:
        xw = (jnp.dot(x_ref[...].reshape(Bt * T, D), wih_ref[...],
                      preferred_element_type=jnp.float32) + b_ref[...])
        xw_ref[...] = xw.reshape(Bt, T, G)
    else:
        for t in range(T):
            xw_ref[:, t, :] = (jnp.dot(x_ref[:, t, :], wih_ref[...],
                                       preferred_element_type=jnp.float32)
                               + b_ref[...])

    whh = whh_ref[...]                        # hoisted: reused every step

    def lstm_cell(gates, c):
        # One full-width (4H lanes) sigmoid, then redo tanh on the g quarter:
        # fewer masked sub-vreg activations on the serial critical path.
        sg = _sigmoid(gates)
        i_g = sg[:, 0 * H:1 * H]
        f_g = sg[:, 1 * H:2 * H]
        o_g = sg[:, 3 * H:4 * H]
        g_g = jnp.tanh(gates[:, 2 * H:3 * H])
        c = f_g * c + i_g * g_g
        h = o_g * jnp.tanh(c)
        return h, c

    def step(t, carry):
        h, c = carry
        gates = xw_ref[:, t, :] + jnp.dot(h, whh,
                                          preferred_element_type=jnp.float32)
        h, c = lstm_cell(gates, c)
        hs_ref[:, t, :] = h                   # stash h_t for the deferred fc
        return (h, c)

    init = (jnp.zeros((Bt, H), jnp.float32), jnp.zeros((Bt, H), jnp.float32))
    if T <= 16:
        # small static T: full unroll with static slices
        carry = init
        for t in range(T):
            carry = step(t, carry)
    else:
        # larger T: bounded live ranges, scheduler-visible unrolled loop
        jax.lax.fori_loop(0, T, step, init, unroll=True)

    # ---- deferred epilogue --------------------------------------------------
    # One lane-dense fc matmul for all timesteps, then the per-batch
    # (block-diagonal) pooling contraction: O(B), not O(B^2).
    out_fc = (jnp.dot(hs_ref[...].reshape(Bt * T, H), wfc_ref[...],
                      preferred_element_type=jnp.float32)
              + bfc_ref[...])                                  # (Bt*T, NPAD)
    out_fc = out_fc.reshape(Bt, T, NPAD)
    o_ref[...] = jnp.einsum("bpt,btn->bpn", m_ref[...], out_fc,
                            preferred_element_type=jnp.float32)


def prepare_params(params):
    """One-time parameter preprocessing (transposes / zero-padding hoisted)."""
    w_ih, w_hh, b_ih, b_hh, w_fc, b_fc = params
    H = w_hh.shape[1]
    n_out = w_fc.shape[0]
    wih_t = jnp.transpose(w_ih).astype(jnp.float32)            # (D, 4H)
    whh_t = jnp.transpose(w_hh).astype(jnp.float32)            # (H, 4H)
    b = (b_ih + b_hh).reshape(1, 4 * H).astype(jnp.float32)    # (1, 4H)
    wfc_pad = jnp.zeros((H, _NPAD), jnp.float32).at[:, :n_out].set(
        jnp.transpose(w_fc).astype(jnp.float32))               # (H, NPAD)
    bfc_pad = jnp.zeros((1, _NPAD), jnp.float32).at[:, :n_out].set(
        b_fc.astype(jnp.float32))                              # (1, NPAD)
    # TODO(synk): optionally keep a bf16 copy of wih/whh for the MXU matmuls
    #             (v5e win) once the 1e-4 tolerance is re-verified.
    return (wih_t, whh_t, b, wfc_pad, bfc_pad)


def _tile_vmem_bytes(bt, T, D, H, P):
    """Rough per-grid-step VMEM footprint (double-buffered inputs + scratch)."""
    G, f = 4 * H, 4
    x_in = 2 * bt * T * D * f
    m_in = 2 * bt * P * T * f
    o_out = 2 * bt * P * _NPAD * f
    w = 2 * (D * G + H * G + G + H * _NPAD + _NPAD) * f
    scratch = bt * T * (G + H) * f
    return x_in + m_in + o_out + w + scratch


def _pick_batch_tile(B, T, D, H, P, budget=24 << 20):
    """Largest divisor of B whose per-step VMEM fits the budget (v7x-safe:
    stays well under the 32 MiB scoped default / 64 MiB physical VMEM)."""
    for bt in range(B, 0, -1):
        if B % bt == 0 and _tile_vmem_bytes(bt, T, D, H, P) <= budget:
            return bt
    return 1


@functools.partial(jax.jit, static_argnames=("num_photos",))
def tracklet_forward(x, prep, num_photos):
    """x: (B, T, D) float32. prep: output of prepare_params.
    Returns (B, num_photos, 3) float32."""
    B, T, D = x.shape
    wih_t, whh_t, b, wfc_pad, bfc_pad = prep
    H = whh_t.shape[0]
    P = num_photos

    x = x.astype(jnp.float32)

    # Per-batch pooling tensor (block-diagonal structure made explicit):
    # m[b, p, t] = 1/count[b, p] if photo_id[b, t] == p else 0.
    # NOTE: ids < 0 or >= P are dropped (zero row -> zero output); torch's
    #       .long() fancy indexing would wrap negatives. Ids assumed in [0, P).
    pid = x[:, :, 2].astype(jnp.int32)                              # (B, T)
    onehot = (pid[:, :, None]
              == jnp.arange(P, dtype=jnp.int32)[None, None, :]
              ).astype(jnp.float32)                                 # (B, T, P)
    counts = jnp.sum(onehot, axis=1)                                # (B, P)
    inv = 1.0 / jnp.where(counts == 0.0, 1.0, counts)
    m = jnp.transpose(onehot, (0, 2, 1)) * inv[:, :, None]          # (B, P, T)

    Bt = _pick_batch_tile(B, T, D, H, P)
    nb = B // Bt

    in_specs = [
        pl.BlockSpec((Bt, T, D), lambda i: (i, 0, 0)),      # x  (batch-tiled)
        pl.BlockSpec((D, 4 * H), lambda i: (0, 0)),          # w_ih
        pl.BlockSpec((H, 4 * H), lambda i: (0, 0)),          # w_hh
        pl.BlockSpec((1, 4 * H), lambda i: (0, 0)),          # bias
        pl.BlockSpec((H, _NPAD), lambda i: (0, 0)),          # w_fc (padded)
        pl.BlockSpec((1, _NPAD), lambda i: (0, 0)),          # b_fc (padded)
        pl.BlockSpec((Bt, P, T), lambda i: (i, 0, 0)),       # m  (batch-tiled)
    ]
    out_specs = pl.BlockSpec((Bt, P, _NPAD), lambda i: (i, 0, 0))

    est = _tile_vmem_bytes(Bt, T, D, H, P)
    cp_kwargs = dict(dimension_semantics=("parallel",))
    if est > (30 << 20):
        cp_kwargs["vmem_limit_bytes"] = min(est + (4 << 20), 60 << 20)

    out = pl.pallas_call(
        tracklet_kernel,
        out_shape=jax.ShapeDtypeStruct((B, P, _NPAD), jnp.float32),
        grid=(nb,),
        in_specs=in_specs,
        out_specs=out_specs,
        scratch_shapes=[pltpu.VMEM((Bt, T, 4 * H), jnp.float32),   # xw staging
                        pltpu.VMEM((Bt, T, H), jnp.float32)],      # hidden states
        compiler_params=pltpu.CompilerParams(**cp_kwargs),
    )(x, wih_t, whh_t, b, wfc_pad, bfc_pad, m)

    return out[:, :, :3]


def tracklet_reference(x, params, num_photos):
    """Pure-JAX reference mirroring the PyTorch module semantics."""
    w_ih, w_hh, b_ih, b_hh, w_fc, b_fc = params
    B, T, D = x.shape
    H = w_hh.shape[1]

    def step(carry, x_t):
        h, c = carry
        gates = x_t @ w_ih.T + b_ih + h @ w_hh.T + b_hh
        i_g = jax.nn.sigmoid(gates[:, 0 * H:1 * H])
        f_g = jax.nn.sigmoid(gates[:, 1 * H:2 * H])
        g_g = jnp.tanh(gates[:, 2 * H:3 * H])
        o_g = jax.nn.sigmoid(gates[:, 3 * H:4 * H])
        c = f_g * c + i_g * g_g
        h = o_g * jnp.tanh(c)
        return (h, c), h

    (_, _), hs = jax.lax.scan(step, (jnp.zeros((B, H)), jnp.zeros((B, H))),
                              jnp.transpose(x, (1, 0, 2)))
    hs = jnp.transpose(hs, (1, 0, 2))                              # (B, T, H)
    out = hs @ w_fc.T + b_fc                                       # (B, T, 3)

    pid = x[:, :, 2].astype(jnp.int32)
    onehot = (pid[:, :, None]
              == jnp.arange(num_photos)[None, None, :]).astype(jnp.float32)
    photo_out = jnp.einsum("btp,btc->bpc", onehot, out)
    counts = jnp.sum(onehot, axis=1)
    counts = jnp.where(counts == 0.0, 1.0, counts)
    return photo_out / counts[:, :, None]


def init_params(key, input_size, hidden_size, output_size):
    ks = jax.random.split(key, 6)
    s = 0.1
    w_ih = s * jax.random.normal(ks[0], (4 * hidden_size, input_size), jnp.float32)
    w_hh = s * jax.random.normal(ks[1], (4 * hidden_size, hidden_size), jnp.float32)
    b_ih = s * jax.random.normal(ks[2], (4 * hidden_size,), jnp.float32)
    b_hh = s * jax.random.normal(ks[3], (4 * hidden_size,), jnp.float32)
    w_fc = s * jax.random.normal(ks[4], (output_size, hidden_size), jnp.float32)
    b_fc = s * jax.random.normal(ks[5], (output_size,), jnp.float32)
    return (w_ih, w_hh, b_ih, b_hh, w_fc, b_fc)


if __name__ == "__main__":
    # small shapes consistent with the module
    B, T = 2, 8                     # batch, total_objects (sequence length)
    input_size, hidden_size, output_size = 4, 32, 3
    num_photos = 4

    key = jax.random.PRNGKey(0)
    kp, kx, kid = jax.random.split(key, 3)

    params = init_params(kp, input_size, hidden_size, output_size)
    prep = prepare_params(params)           # one-time preprocessing (hoisted)

    x = jax.random.normal(kx, (B, T, input_size), jnp.float32)
    photo_ids = jax.random.randint(kid, (B, T), 0, num_photos).astype(jnp.float32)
    x = x.at[:, :, 2].set(photo_ids)        # column 2 carries the photo id

    out = tracklet_forward(x, prep, num_photos=num_photos)
    out = jax.block_until_ready(out)

    ref = tracklet_reference(x, params, num_photos)
    np.testing.assert_allclose(np.asarray(out), np.asarray(ref),
                               rtol=1e-4, atol=1e-4)

    print("KERNEL_OK")
</pallas_src>

<mosaic_0001>
module attributes {stable_mosaic.version = 11 : i64} {
  func.func @tracklet_kernel(%arg0: i32, %arg1: memref<2x8x4xf32, #tpu.memory_space<vmem>>, %arg2: memref<4x128xf32, #tpu.memory_space<vmem>>, %arg3: memref<32x128xf32, #tpu.memory_space<vmem>>, %arg4: memref<1x128xf32, #tpu.memory_space<vmem>>, %arg5: memref<32x128xf32, #tpu.memory_space<vmem>>, %arg6: memref<1x128xf32, #tpu.memory_space<vmem>>, %arg7: memref<2x4x8xf32, #tpu.memory_space<vmem>>, %arg8: memref<2x4x128xf32, #tpu.memory_space<vmem>>, %arg9: memref<2x8x128xf32, #tpu.memory_space<vmem>>, %arg10: memref<2x8x32xf32, #tpu.memory_space<vmem>>) attributes {dimension_semantics = [#tpu.dimension_semantics<parallel>], iteration_bounds = array<i64: 1>, scalar_prefetch = 0 : i64, scratch_operands = 2 : i64, tpu.core_type = #tpu.core_type<tc>, window_params = [{transform_indices = @transform_0, window_bounds = array<i64: 2, 8, 4>}, {pipeline_mode = #tpu.pipeline_mode<synchronous>, transform_indices = @transform_1, window_bounds = array<i64: 4, 128>}, {pipeline_mode = #tpu.pipeline_mode<synchronous>, transform_indices = @transform_2, window_bounds = array<i64: 32, 128>}, {pipeline_mode = #tpu.pipeline_mode<synchronous>, transform_indices = @transform_3, window_bounds = array<i64: 1, 128>}, {pipeline_mode = #tpu.pipeline_mode<synchronous>, transform_indices = @transform_4, window_bounds = array<i64: 32, 128>}, {pipeline_mode = #tpu.pipeline_mode<synchronous>, transform_indices = @transform_5, window_bounds = array<i64: 1, 128>}, {transform_indices = @transform_6, window_bounds = array<i64: 2, 4, 8>}, {transform_indices = @transform_7, window_bounds = array<i64: 2, 4, 128>}]} {
    %c0 = arith.constant 0 : index
    %c0_0 = arith.constant 0 : index
    %c0_1 = arith.constant 0 : index
    %0 = vector.load %arg1[%c0, %c0_0, %c0_1] : memref<2x8x4xf32, #tpu.memory_space<vmem>>, vector<2x8x4xf32>
    %1 = vector.shape_cast %0 : vector<2x8x4xf32> to vector<16x4xf32>
    %c0_2 = arith.constant 0 : index
    %c0_3 = arith.constant 0 : index
    %2 = vector.load %arg2[%c0_2, %c0_3] : memref<4x128xf32, #tpu.memory_space<vmem>>, vector<4x128xf32>
    %cst = arith.constant dense<0.000000e+00> : vector<16x128xf32>
    %3 = tpu.matmul %1, %2, %cst {dimension_numbers = #tpu.dot_dimension_numbers<[1], [0], [0], [1], [0, 0, 1, 1], [], []>} : vector<16x4xf32>, vector<4x128xf32>, vector<16x128xf32> -> vector<16x128xf32>
    %c0_4 = arith.constant 0 : index
    %c0_5 = arith.constant 0 : index
    %4 = vector.load %arg4[%c0_4, %c0_5] : memref<1x128xf32, #tpu.memory_space<vmem>>, vector<1x128xf32>
    %5 = vector.broadcast %4 : vector<1x128xf32> to vector<16x128xf32>
    %6 = arith.addf %3, %5 : vector<16x128xf32>
    %7 = vector.shape_cast %6 : vector<16x128xf32> to vector<2x8x128xf32>
    %c0_6 = arith.constant 0 : index
    %c0_7 = arith.constant 0 : index
    %c0_8 = arith.constant 0 : index
    %8 = vector.load %arg9[%c0_6, %c0_7, %c0_8] : memref<2x8x128xf32, #tpu.memory_space<vmem>>, vector<2x8x128xf32>
    tpu.vector_store %arg9[%c0_6, %c0_7, %c0_8], %7 {strides = array<i32>} : memref<2x8x128xf32, #tpu.memory_space<vmem>>, vector<2x8x128xf32>,
    %c0_9 = arith.constant 0 : index
    %c0_10 = arith.constant 0 : index
    %9 = vector.load %arg3[%c0_9, %c0_10] : memref<32x128xf32, #tpu.memory_space<vmem>>, vector<32x128xf32>
    %cst_11 = arith.constant 0.000000e+00 : f32
    %10 = vector.broadcast %cst_11 : f32 to vector<2x32xf32>
    %cst_12 = arith.constant 0.000000e+00 : f32
    %11 = vector.broadcast %cst_12 : f32 to vector<2x32xf32>
    %c0_13 = arith.constant 0 : index
    %c0_14 = arith.constant 0 : index
    %c0_15 = arith.constant 0 : index
    %12 = vector.load %arg9[%c0_13, %c0_14, %c0_15] : memref<2x8x128xf32, #tpu.memory_space<vmem>>, vector<2x1x128xf32>
    %13 = vector.shape_cast %12 : vector<2x1x128xf32> to vector<2x128xf32>
    %cst_16 = arith.constant dense<0.000000e+00> : vector<2x128xf32>
    %14 = tpu.matmul %10, %9, %cst_16 {dimension_numbers = #tpu.dot_dimension_numbers<[1], [0], [0], [1], [0, 0, 1, 1], [], []>} : vector<2x32xf32>, vector<32x128xf32>, vector<2x128xf32> -> vector<2x128xf32>
    %15 = arith.addf %13, %14 : vector<2x128xf32>
    %cst_17 = arith.constant 5.000000e-01 : f32
    %16 = vector.broadcast %cst_17 : f32 to vector<2x128xf32>
    %17 = arith.mulf %16, %15 : vector<2x128xf32>
    %18 = math.tanh %17 : vector<2x128xf32>
    %cst_18 = arith.constant 5.000000e-01 : f32
    %19 = vector.broadcast %cst_18 : f32 to vector<2x128xf32>
    %20 = arith.mulf %19, %18 : vector<2x128xf32>
    %cst_19 = arith.constant 5.000000e-01 : f32
    %21 = vector.broadcast %cst_19 : f32 to vector<2x128xf32>
    %22 = arith.addf %20, %21 : vector<2x128xf32>
    %23 = vector.extract_strided_slice %22 {offsets = [0, 0], sizes = [2, 32], strides = [1, 1]} : vector<2x128xf32> to vector<2x32xf32>
    %24 = vector.extract_strided_slice %22 {offsets = [0, 32], sizes = [2, 32], strides = [1, 1]} : vector<2x128xf32> to vector<2x32xf32>
    %25 = vector.extract_strided_slice %22 {offsets = [0, 96], sizes = [2, 32], strides = [1, 1]} : vector<2x128xf32> to vector<2x32xf32>
    %26 = vector.extract_strided_slice %15 {offsets = [0, 64], sizes = [2, 32], strides = [1, 1]} : vector<2x128xf32> to vector<2x32xf32>
    %27 = math.tanh %26 : vector<2x32xf32>
    %28 = arith.mulf %24, %11 : vector<2x32xf32>
    %29 = arith.mulf %23, %27 : vector<2x32xf32>
    %30 = arith.addf %28, %29 : vector<2x32xf32>
    %31 = math.tanh %30 : vector<2x32xf32>
    %32 = arith.mulf %25, %31 : vector<2x32xf32>
    %c0_20 = arith.constant 0 : index
    %c0_21 = arith.constant 0 : index
    %c0_22 = arith.constant 0 : index
    %33 = vector.load %arg10[%c0_20, %c0_21, %c0_22] : memref<2x8x32xf32, #tpu.memory_space<vmem>>, vector<2x1x32xf32>
    %34 = vector.shape_cast %33 : vector<2x1x32xf32> to vector<2x32xf32>
    %35 = vector.shape_cast %32 : vector<2x32xf32> to vector<2x1x32xf32>
    tpu.vector_store %arg10[%c0_20, %c0_21, %c0_22], %35 {strides = array<i32>} : memref<2x8x32xf32, #tpu.memory_space<vmem>>, vector<2x1x32xf32>,
    %c0_23 = arith.constant 0 : index
    %c1 = arith.constant 1 : index
    %c0_24 = arith.constant 0 : index
    %36 = vector.load %arg9[%c0_23, %c1, %c0_24] : memref<2x8x128xf32, #tpu.memory_space<vmem>>, vector<2x1x128xf32>
    %37 = vector.shape_cast %36 : vector<2x1x128xf32> to vector<2x128xf32>
    %cst_25 = arith.constant dense<0.000000e+00> : vector<2x128xf32>
    %38 = tpu.matmul %32, %9, %cst_25 {dimension_numbers = #tpu.dot_dimension_numbers<[1], [0], [0], [1], [0, 0, 1, 1], [], []>} : vector<2x32xf32>, vector<32x128xf32>, vector<2x128xf32> -> vector<2x128xf32>
    %39 = arith.addf %37, %38 : vector<2x128xf32>
    %cst_26 = arith.constant 5.000000e-01 : f32
    %40 = vector.broadcast %cst_26 : f32 to vector<2x128xf32>
    %41 = arith.mulf %40, %39 : vector<2x128xf32>
    %42 = math.tanh %41 : vector<2x128xf32>
    %cst_27 = arith.constant 5.000000e-01 : f32
    %43 = vector.broadcast %cst_27 : f32 to vector<2x128xf32>
    %44 = arith.mulf %43, %42 : vector<2x128xf32>
    %cst_28 = arith.constant 5.000000e-01 : f32
    %45 = vector.broadcast %cst_28 : f32 to vector<2x128xf32>
    %46 = arith.addf %44, %45 : vector<2x128xf32>
    %47 = vector.extract_strided_slice %46 {offsets = [0, 0], sizes = [2, 32], strides = [1, 1]} : vector<2x128xf32> to vector<2x32xf32>
    %48 = vector.extract_strided_slice %46 {offsets = [0, 32], sizes = [2, 32], strides = [1, 1]} : vector<2x128xf32> to vector<2x32xf32>
    %49 = vector.extract_strided_slice %46 {offsets = [0, 96], sizes = [2, 32], strides = [1, 1]} : vector<2x128xf32> to vector<2x32xf32>
    %50 = vector.extract_strided_slice %39 {offsets = [0, 64], sizes = [2, 32], strides = [1, 1]} : vector<2x128xf32> to vector<2x32xf32>
    %51 = math.tanh %50 : vector<2x32xf32>
    %52 = arith.mulf %48, %30 : vector<2x32xf32>
    %53 = arith.mulf %47, %51 : vector<2x32xf32>
    %54 = arith.addf %52, %53 : vector<2x32xf32>
    %55 = math.tanh %54 : vector<2x32xf32>
    %56 = arith.mulf %49, %55 : vector<2x32xf32>
    %c0_29 = arith.constant 0 : index
    %c1_30 = arith.constant 1 : index
    %c0_31 = arith.constant 0 : index
    %57 = vector.load %arg10[%c0_29, %c1_30, %c0_31] : memref<2x8x32xf32, #tpu.memory_space<vmem>>, vector<2x1x32xf32>
    %58 = vector.shape_cast %57 : vector<2x1x32xf32> to vector<2x32xf32>
    %59 = vector.shape_cast %56 : vector<2x32xf32> to vector<2x1x32xf32>
    tpu.vector_store %arg10[%c0_29, %c1_30, %c0_31], %59 {strides = array<i32>} : memref<2x8x32xf32, #tpu.memory_space<vmem>>, vector<2x1x32xf32>,
    %c0_32 = arith.constant 0 : index
    %c2 = arith.constant 2 : index
    %c0_33 = arith.constant 0 : index
    %60 = vector.load %arg9[%c0_32, %c2, %c0_33] : memref<2x8x128xf32, #tpu.memory_space<vmem>>, vector<2x1x128xf32>
    %61 = vector.shape_cast %60 : vector<2x1x128xf32> to vector<2x128xf32>
    %cst_34 = arith.constant dense<0.000000e+00> : vector<2x128xf32>
    %62 = tpu.matmul %56, %9, %cst_34 {dimension_numbers = #tpu.dot_dimension_numbers<[1], [0], [0], [1], [0, 0, 1, 1], [], []>} : vector<2x32xf32>, vector<32x128xf32>, vector<2x128xf32> -> vector<2x128xf32>
    %63 = arith.addf %61, %62 : vector<2x128xf32>
    %cst_35 = arith.constant 5.000000e-01 : f32
    %64 = vector.broadcast %cst_35 : f32 to vector<2x128xf32>
    %65 = arith.mulf %64, %63 : vector<2x128xf32>
    %66 = math.tanh %65 : vector<2x128xf32>
    %cst_36 = arith.constant 5.000000e-01 : f32
    %67 = vector.broadcast %cst_36 : f32 to vector<2x128xf32>
    %68 = arith.mulf %67, %66 : vector<2x128xf32>
    %cst_37 = arith.constant 5.000000e-01 : f32
    %69 = vector.broadcast %cst_37 : f32 to vector<2x128xf32>
    %70 = arith.addf %68, %69 : vector<2x128xf32>
    %71 = vector.extract_strided_slice %70 {offsets = [0, 0], sizes = [2, 32], strides = [1, 1]} : vector<2x128xf32> to vector<2x32xf32>
    %72 = vector.extract_strided_slice %70 {offsets = [0, 32], sizes = [2, 32], strides = [1, 1]} : vector<2x128xf32> to vector<2x32xf32>
    %73 = vector.extract_strided_slice %70 {offsets = [0, 96], sizes = [2, 32], strides = [1, 1]} : vector<2x128xf32> to vector<2x32xf32>
    %74 = vector.extract_strided_slice %63 {offsets = [0, 64], sizes = [2, 32], strides = [1, 1]} : vector<2x128xf32> to vector<2x32xf32>
    %75 = math.tanh %74 : vector<2x32xf32>
    %76 = arith.mulf %72, %54 : vector<2x32xf32>
    %77 = arith.mulf %71, %75 : vector<2x32xf32>
    %78 = arith.addf %76, %77 : vector<2x32xf32>
    %79 = math.tanh %78 : vector<2x32xf32>
    %80 = arith.mulf %73, %79 : vector<2x32xf32>
    %c0_38 = arith.constant 0 : index
    %c2_39 = arith.constant 2 : index
    %c0_40 = arith.constant 0 : index
    %81 = vector.load %arg10[%c0_38, %c2_39, %c0_40] : memref<2x8x32xf32, #tpu.memory_space<vmem>>, vector<2x1x32xf32>
    %82 = vector.shape_cast %81 : vector<2x1x32xf32> to vector<2x32xf32>
    %83 = vector.shape_cast %80 : vector<2x32xf32> to vector<2x1x32xf32>
    tpu.vector_store %arg10[%c0_38, %c2_39, %c0_40], %83 {strides = array<i32>} : memref<2x8x32xf32, #tpu.memory_space<vmem>>, vector<2x1x32xf32>,
    %c0_41 = arith.constant 0 : index
    %c3 = arith.constant 3 : index
    %c0_42 = arith.constant 0 : index
    %84 = vector.load %arg9[%c0_41, %c3, %c0_42] : memref<2x8x128xf32, #tpu.memory_space<vmem>>, vector<2x1x128xf32>
    %85 = vector.shape_cast %84 : vector<2x1x128xf32> to vector<2x128xf32>
    %cst_43 = arith.constant dense<0.000000e+00> : vector<2x128xf32>
    %86 = tpu.matmul %80, %9, %cst_43 {dimension_numbers = #tpu.dot_dimension_numbers<[1], [0], [0], [1], [0, 0, 1, 1], [], []>} : vector<2x32xf32>, vector<32x128xf32>, vector<2x128xf32> -> vector<2x128xf32>
    %87 = arith.addf %85, %86 : vector<2x128xf32>
    %cst_44 = arith.constant 5.000000e-01 : f32
    %88 = vector.broadcast %cst_44 : f32 to vector<2x128xf32>
    %89 = arith.mulf %88, %87 : vector<2x128xf32>
    %90 = math.tanh %89 : vector<2x128xf32>
    %cst_45 = arith.constant 5.000000e-01 : f32
    %91 = vector.broadcast %cst_45 : f32 to vector<2x128xf32>
    %92 = arith.mulf %91, %90 : vector<2x128xf32>
    %cst_46 = arith.constant 5.000000e-01 : f32
    %93 = vector.broadcast %cst_46 : f32 to vector<2x128xf32>
    %94 = arith.addf %92, %93 : vector<2x128xf32>
    %95 = vector.extract_strided_slice %94 {offsets = [0, 0], sizes = [2, 32], strides = [1, 1]} : vector<2x128xf32> to vector<2x32xf32>
    %96 = vector.extract_strided_slice %94 {offsets = [0, 32], sizes = [2, 32], strides = [1, 1]} : vector<2x128xf32> to vector<2x32xf32>
    %97 = vector.extract_strided_slice %94 {offsets = [0, 96], sizes = [2, 32], strides = [1, 1]} : vector<2x128xf32> to vector<2x32xf32>
    %98 = vector.extract_strided_slice %87 {offsets = [0, 64], sizes = [2, 32], strides = [1, 1]} : vector<2x128xf32> to vector<2x32xf32>
    %99 = math.tanh %98 : vector<2x32xf32>
    %100 = arith.mulf %96, %78 : vector<2x32xf32>
    %101 = arith.mulf %95, %99 : vector<2x32xf32>
    %102 = arith.addf %100, %101 : vector<2x32xf32>
    %103 = math.tanh %102 : vector<2x32xf32>
    %104 = arith.mulf %97, %103 : vector<2x32xf32>
    %c0_47 = arith.constant 0 : index
    %c3_48 = arith.constant 3 : index
    %c0_49 = arith.constant 0 : index
    %105 = vector.load %arg10[%c0_47, %c3_48, %c0_49] : memref<2x8x32xf32, #tpu.memory_space<vmem>>, vector<2x1x32xf32>
    %106 = vector.shape_cast %105 : vector<2x1x32xf32> to vector<2x32xf32>
    %107 = vector.shape_cast %104 : vector<2x32xf32> to vector<2x1x32xf32>
    tpu.vector_store %arg10[%c0_47, %c3_48, %c0_49], %107 {strides = array<i32>} : memref<2x8x32xf32, #tpu.memory_space<vmem>>, vector<2x1x32xf32>,
    %c0_50 = arith.constant 0 : index
    %c4 = arith.constant 4 : index
    %c0_51 = arith.constant 0 : index
    %108 = vector.load %arg9[%c0_50, %c4, %c0_51] : memref<2x8x128xf32, #tpu.memory_space<vmem>>, vector<2x1x128xf32>
    %109 = vector.shape_cast %108 : vector<2x1x128xf32> to vector<2x128xf32>
    %cst_52 = arith.constant dense<0.000000e+00> : vector<2x128xf32>
    %110 = tpu.matmul %104, %9, %cst_52 {dimension_numbers = #tpu.dot_dimension_numbers<[1], [0], [0], [1], [0, 0, 1, 1], [], []>} : vector<2x32xf32>, vector<32x128xf32>, vector<2x128xf32> -> vector<2x128xf32>
    %111 = arith.addf %109, %110 : vector<2x128xf32>
    %cst_53 = arith.constant 5.000000e-01 : f32
    %112 = vector.broadcast %cst_53 : f32 to vector<2x128xf32>
    %113 = arith.mulf %112, %111 : vector<2x128xf32>
    %114 = math.tanh %113 : vector<2x128xf32>
    %cst_54 = arith.constant 5.000000e-01 : f32
    %115 = vector.broadcast %cst_54 : f32 to vector<2x128xf32>
    %116 = arith.mulf %115, %114 : vector<2x128xf32>
    %cst_55 = arith.constant 5.000000e-01 : f32
    %117 = vector.broadcast %cst_55 : f32 to vector<2x128xf32>
    %118 = arith.addf %116, %117 : vector<2x128xf32>
    %119 = vector.extract_strided_slice %118 {offsets = [0, 0], sizes = [2, 32], strides = [1, 1]} : vector<2x128xf32> to vector<2x32xf32>
    %120 = vector.extract_strided_slice %118 {offsets = [0, 32], sizes = [2, 32], strides = [1, 1]} : vector<2x128xf32> to vector<2x32xf32>
    %121 = vector.extract_strided_slice %118 {offsets = [0, 96], sizes = [2, 32], strides = [1, 1]} : vector<2x128xf32> to vector<2x32xf32>
    %122 = vector.extract_strided_slice %111 {offsets = [0, 64], sizes = [2, 32], strides = [1, 1]} : vector<2x128xf32> to vector<2x32xf32>
    %123 = math.tanh %122 : vector<2x32xf32>
    %124 = arith.mulf %120, %102 : vector<2x32xf32>
    %125 = arith.mulf %119, %123 : vector<2x32xf32>
    %126 = arith.addf %124, %125 : vector<2x32xf32>
    %127 = math.tanh %126 : vector<2x32xf32>
    %128 = arith.mulf %121, %127 : vector<2x32xf32>
    %c0_56 = arith.constant 0 : index
    %c4_57 = arith.constant 4 : index
    %c0_58 = arith.constant 0 : index
    %129 = vector.load %arg10[%c0_56, %c4_57, %c0_58] : memref<2x8x32xf32, #tpu.memory_space<vmem>>, vector<2x1x32xf32>
    %130 = vector.shape_cast %129 : vector<2x1x32xf32> to vector<2x32xf32>
    %131 = vector.shape_cast %128 : vector<2x32xf32> to vector<2x1x32xf32>
    tpu.vector_store %arg10[%c0_56, %c4_57, %c0_58], %131 {strides = array<i32>} : memref<2x8x32xf32, #tpu.memory_space<vmem>>, vector<2x1x32xf32>,
    %c0_59 = arith.constant 0 : index
    %c5 = arith.constant 5 : index
    %c0_60 = arith.constant 0 : index
    %132 = vector.load %arg9[%c0_59, %c5, %c0_60] : memref<2x8x128xf32, #tpu.memory_space<vmem>>, vector<2x1x128xf32>
    %133 = vector.shape_cast %132 : vector<2x1x128xf32> to vector<2x128xf32>
    %cst_61 = arith.constant dense<0.000000e+00> : vector<2x128xf32>
    %134 = tpu.matmul %128, %9, %cst_61 {dimension_numbers = #tpu.dot_dimension_numbers<[1], [0], [0], [1], [0, 0, 1, 1], [], []>} : vector<2x32xf32>, vector<32x128xf32>, vector<2x128xf32> -> vector<2x128xf32>
    %135 = arith.addf %133, %134 : vector<2x128xf32>
    %cst_62 = arith.constant 5.000000e-01 : f32
    %136 = vector.broadcast %cst_62 : f32 to vector<2x128xf32>
    %137 = arith.mulf %136, %135 : vector<2x128xf32>
    %138 = math.tanh %137 : vector<2x128xf32>
    %cst_63 = arith.constant 5.000000e-01 : f32
    %139 = vector.broadcast %cst_63 : f32 to vector<2x128xf32>
    %140 = arith.mulf %139, %138 : vector<2x128xf32>
    %cst_64 = arith.constant 5.000000e-01 : f32
    %141 = vector.broadcast %cst_64 : f32 to vector<2x128xf32>
    %142 = arith.addf %140, %141 : vector<2x128xf32>
    %143 = vector.extract_strided_slice %142 {offsets = [0, 0], sizes = [2, 32], strides = [1, 1]} : vector<2x128xf32> to vector<2x32xf32>
    %144 = vector.extract_strided_slice %142 {offsets = [0, 32], sizes = [2, 32], strides = [1, 1]} : vector<2x128xf32> to vector<2x32xf32>
    %145 = vector.extract_strided_slice %142 {offsets = [0, 96], sizes = [2, 32], strides = [1, 1]} : vector<2x128xf32> to vector<2x32xf32>
    %146 = vector.extract_strided_slice %135 {offsets = [0, 64], sizes = [2, 32], strides = [1, 1]} : vector<2x128xf32> to vector<2x32xf32>
    %147 = math.tanh %146 : vector<2x32xf32>
    %148 = arith.mulf %144, %126 : vector<2x32xf32>
    %149 = arith.mulf %143, %147 : vector<2x32xf32>
    %150 = arith.addf %148, %149 : vector<2x32xf32>
    %151 = math.tanh %150 : vector<2x32xf32>
    %152 = arith.mulf %145, %151 : vector<2x32xf32>
    %c0_65 = arith.constant 0 : index
    %c5_66 = arith.constant 5 : index
    %c0_67 = arith.constant 0 : index
    %153 = vector.load %arg10[%c0_65, %c5_66, %c0_67] : memref<2x8x32xf32, #tpu.memory_space<vmem>>, vector<2x1x32xf32>
    %154 = vector.shape_cast %153 : vector<2x1x32xf32> to vector<2x32xf32>
    %155 = vector.shape_cast %152 : vector<2x32xf32> to vector<2x1x32xf32>
    tpu.vector_store %arg10[%c0_65, %c5_66, %c0_67], %155 {strides = array<i32>} : memref<2x8x32xf32, #tpu.memory_space<vmem>>, vector<2x1x32xf32>,
    %c0_68 = arith.constant 0 : index
    %c6 = arith.constant 6 : index
    %c0_69 = arith.constant 0 : index
    %156 = vector.load %arg9[%c0_68, %c6, %c0_69] : memref<2x8x128xf32, #tpu.memory_space<vmem>>, vector<2x1x128xf32>
    %157 = vector.shape_cast %156 : vector<2x1x128xf32> to vector<2x128xf32>
    %cst_70 = arith.constant dense<0.000000e+00> : vector<2x128xf32>
    %158 = tpu.matmul %152, %9, %cst_70 {dimension_numbers = #tpu.dot_dimension_numbers<[1], [0], [0], [1], [0, 0, 1, 1], [], []>} : vector<2x32xf32>, vector<32x128xf32>, vector<2x128xf32> -> vector<2x128xf32>
    %159 = arith.addf %157, %158 : vector<2x128xf32>
    %cst_71 = arith.constant 5.000000e-01 : f32
    %160 = vector.broadcast %cst_71 : f32 to vector<2x128xf32>
    %161 = arith.mulf %160, %159 : vector<2x128xf32>
    %162 = math.tanh %161 : vector<2x128xf32>
    %cst_72 = arith.constant 5.000000e-01 : f32
    %163 = vector.broadcast %cst_72 : f32 to vector<2x128xf32>
    %164 = arith.mulf %163, %162 : vector<2x128xf32>
    %cst_73 = arith.constant 5.000000e-01 : f32
    %165 = vector.broadcast %cst_73 : f32 to vector<2x128xf32>
    %166 = arith.addf %164, %165 : vector<2x128xf32>
    %167 = vector.extract_strided_slice %166 {offsets = [0, 0], sizes = [2, 32], strides = [1, 1]} : vector<2x128xf32> to vector<2x32xf32>
    %168 = vector.extract_strided_slice %166 {offsets = [0, 32], sizes = [2, 32], strides = [1, 1]} : vector<2x128xf32> to vector<2x32xf32>
    %169 = vector.extract_strided_slice %166 {offsets = [0, 96], sizes = [2, 32], strides = [1, 1]} : vector<2x128xf32> to vector<2x32xf32>
    %170 = vector.extract_strided_slice %159 {offsets = [0, 64], sizes = [2, 32], strides = [1, 1]} : vector<2x128xf32> to vector<2x32xf32>
    %171 = math.tanh %170 : vector<2x32xf32>
    %172 = arith.mulf %168, %150 : vector<2x32xf32>
    %173 = arith.mulf %167, %171 : vector<2x32xf32>
    %174 = arith.addf %172, %173 : vector<2x32xf32>
    %175 = math.tanh %174 : vector<2x32xf32>
    %176 = arith.mulf %169, %175 : vector<2x32xf32>
    %c0_74 = arith.constant 0 : index
    %c6_75 = arith.constant 6 : index
    %c0_76 = arith.constant 0 : index
    %177 = vector.load %arg10[%c0_74, %c6_75, %c0_76] : memref<2x8x32xf32, #tpu.memory_space<vmem>>, vector<2x1x32xf32>
    %178 = vector.shape_cast %177 : vector<2x1x32xf32> to vector<2x32xf32>
    %179 = vector.shape_cast %176 : vector<2x32xf32> to vector<2x1x32xf32>
    tpu.vector_store %arg10[%c0_74, %c6_75, %c0_76], %179 {strides = array<i32>} : memref<2x8x32xf32, #tpu.memory_space<vmem>>, vector<2x1x32xf32>,
    %c0_77 = arith.constant 0 : index
    %c7 = arith.constant 7 : index
    %c0_78 = arith.constant 0 : index
    %180 = vector.load %arg9[%c0_77, %c7, %c0_78] : memref<2x8x128xf32, #tpu.memory_space<vmem>>, vector<2x1x128xf32>
    %181 = vector.shape_cast %180 : vector<2x1x128xf32> to vector<2x128xf32>
    %cst_79 = arith.constant dense<0.000000e+00> : vector<2x128xf32>
    %182 = tpu.matmul %176, %9, %cst_79 {dimension_numbers = #tpu.dot_dimension_numbers<[1], [0], [0], [1], [0, 0, 1, 1], [], []>} : vector<2x32xf32>, vector<32x128xf32>, vector<2x128xf32> -> vector<2x128xf32>
    %183 = arith.addf %181, %182 : vector<2x128xf32>
    %cst_80 = arith.constant 5.000000e-01 : f32
    %184 = vector.broadcast %cst_80 : f32 to vector<2x128xf32>
    %185 = arith.mulf %184, %183 : vector<2x128xf32>
    %186 = math.tanh %185 : vector<2x128xf32>
    %cst_81 = arith.constant 5.000000e-01 : f32
    %187 = vector.broadcast %cst_81 : f32 to vector<2x128xf32>
    %188 = arith.mulf %187, %186 : vector<2x128xf32>
    %cst_82 = arith.constant 5.000000e-01 : f32
    %189 = vector.broadcast %cst_82 : f32 to vector<2x128xf32>
    %190 = arith.addf %188, %189 : vector<2x128xf32>
    %191 = vector.extract_strided_slice %190 {offsets = [0, 0], sizes = [2, 32], strides = [1, 1]} : vector<2x128xf32> to vector<2x32xf32>
    %192 = vector.extract_strided_slice %190 {offsets = [0, 32], sizes = [2, 32], strides = [1, 1]} : vector<2x128xf32> to vector<2x32xf32>
    %193 = vector.extract_strided_slice %190 {offsets = [0, 96], sizes = [2, 32], strides = [1, 1]} : vector<2x128xf32> to vector<2x32xf32>
    %194 = vector.extract_strided_slice %183 {offsets = [0, 64], sizes = [2, 32], strides = [1, 1]} : vector<2x128xf32> to vector<2x32xf32>
    %195 = math.tanh %194 : vector<2x32xf32>
    %196 = arith.mulf %192, %174 : vector<2x32xf32>
    %197 = arith.mulf %191, %195 : vector<2x32xf32>
    %198 = arith.addf %196, %197 : vector<2x32xf32>
    %199 = math.tanh %198 : vector<2x32xf32>
    %200 = arith.mulf %193, %199 : vector<2x32xf32>
    %c0_83 = arith.constant 0 : index
    %c7_84 = arith.constant 7 : index
    %c0_85 = arith.constant 0 : index
    %201 = vector.load %arg10[%c0_83, %c7_84, %c0_85] : memref<2x8x32xf32, #tpu.memory_space<vmem>>, vector<2x1x32xf32>
    %202 = vector.shape_cast %201 : vector<2x1x32xf32> to vector<2x32xf32>
    %203 = vector.shape_cast %200 : vector<2x32xf32> to vector<2x1x32xf32>
    tpu.vector_store %arg10[%c0_83, %c7_84, %c0_85], %203 {strides = array<i32>} : memref<2x8x32xf32, #tpu.memory_space<vmem>>, vector<2x1x32xf32>,
    %c0_86 = arith.constant 0 : index
    %c0_87 = arith.constant 0 : index
    %c0_88 = arith.constant 0 : index
    %204 = vector.load %arg10[%c0_86, %c0_87, %c0_88] : memref<2x8x32xf32, #tpu.memory_space<vmem>>, vector<2x8x32xf32>
    %205 = vector.shape_cast %204 : vector<2x8x32xf32> to vector<16x32xf32>
    %c0_89 = arith.constant 0 : index
    %c0_90 = arith.constant 0 : index
    %206 = vector.load %arg5[%c0_89, %c0_90] : memref<32x128xf32, #tpu.memory_space<vmem>>, vector<32x128xf32>
    %cst_91 = arith.constant dense<0.000000e+00> : vector<16x128xf32>
    %207 = tpu.matmul %205, %206, %cst_91 {dimension_numbers = #tpu.dot_dimension_numbers<[1], [0], [0], [1], [0, 0, 1, 1], [], []>} : vector<16x32xf32>, vector<32x128xf32>, vector<16x128xf32> -> vector<16x128xf32>
    %c0_92 = arith.constant 0 : index
    %c0_93 = arith.constant 0 : index
    %208 = vector.load %arg6[%c0_92, %c0_93] : memref<1x128xf32, #tpu.memory_space<vmem>>, vector<1x128xf32>
    %209 = vector.broadcast %208 : vector<1x128xf32> to vector<16x128xf32>
    %210 = arith.addf %207, %209 : vector<16x128xf32>
    %211 = vector.shape_cast %210 : vector<16x128xf32> to vector<2x8x128xf32>
    %c0_94 = arith.constant 0 : index
    %c0_95 = arith.constant 0 : index
    %c0_96 = arith.constant 0 : index
    %212 = vector.load %arg7[%c0_94, %c0_95, %c0_96] : memref<2x4x8xf32, #tpu.memory_space<vmem>>, vector<2x4x8xf32>
    "tpu.trace_start"() <{level = 10 : i32, message = "bpt,btn->bpn"}> : () -> ()
    %cst_97 = arith.constant dense<0.000000e+00> : vector<2x4x128xf32>
    %213 = tpu.matmul %212, %211, %cst_97 {dimension_numbers = #tpu.dot_dimension_numbers<[2], [1], [1], [2], [0, 0, 0, 1, 1, 2], [0], [0]>} : vector<2x4x8xf32>, vector<2x8x128xf32>, vector<2x4x128xf32> -> vector<2x4x128xf32>
    "tpu.trace_stop"() : () -> ()
    %c0_98 = arith.constant 0 : index
    %c0_99 = arith.constant 0 : index
    %c0_100 = arith.constant 0 : index
    %214 = vector.load %arg8[%c0_98, %c0_99, %c0_100] : memref<2x4x128xf32, #tpu.memory_space<vmem>>, vector<2x4x128xf32>
    tpu.vector_store %arg8[%c0_98, %c0_99, %c0_100], %213 {strides = array<i32>} : memref<2x4x128xf32, #tpu.memory_space<vmem>>, vector<2x4x128xf32>,
    return
  }
  func.func @transform_0(%arg0: i32) -> (i32, i32, i32) {
    %c0_i32 = arith.constant 0 : i32
    %c0_i32_0 = arith.constant 0 : i32
    %c0_i32_1 = arith.constant 0 : i32
    return %arg0, %c0_i32, %c0_i32_0 : i32, i32, i32
  }
  func.func @transform_1(%arg0: i32) -> (i32, i32) {
    %c0_i32 = arith.constant 0 : i32
    %c0_i32_0 = arith.constant 0 : i32
    %c0_i32_1 = arith.constant 0 : i32
    return %c0_i32, %c0_i32_0 : i32, i32
  }
  func.func @transform_2(%arg0: i32) -> (i32, i32) {
    %c0_i32 = arith.constant 0 : i32
    %c0_i32_0 = arith.constant 0 : i32
    %c0_i32_1 = arith.constant 0 : i32
    return %c0_i32, %c0_i32_0 : i32, i32
  }
  func.func @transform_3(%arg0: i32) -> (i32, i32) {
    %c0_i32 = arith.constant 0 : i32
    %c0_i32_0 = arith.constant 0 : i32
    %c0_i32_1 = arith.constant 0 : i32
    return %c0_i32, %c0_i32_0 : i32, i32
  }
  func.func @transform_4(%arg0: i32) -> (i32, i32) {
    %c0_i32 = arith.constant 0 : i32
    %c0_i32_0 = arith.constant 0 : i32
    %c0_i32_1 = arith.constant 0 : i32
    return %c0_i32, %c0_i32_0 : i32, i32
  }
  func.func @transform_5(%arg0: i32) -> (i32, i32) {
    %c0_i32 = arith.constant 0 : i32
    %c0_i32_0 = arith.constant 0 : i32
    %c0_i32_1 = arith.constant 0 : i32
    return %c0_i32, %c0_i32_0 : i32, i32
  }
  func.func @transform_6(%arg0: i32) -> (i32, i32, i32) {
    %c0_i32 = arith.constant 0 : i32
    %c0_i32_0 = arith.constant 0 : i32
    %c0_i32_1 = arith.constant 0 : i32
    return %arg0, %c0_i32, %c0_i32_0 : i32, i32, i32
  }
  func.func @transform_7(%arg0: i32) -> (i32, i32, i32) {
    %c0_i32 = arith.constant 0 : i32
    %c0_i32_0 = arith.constant 0 : i32
    %c0_i32_1 = arith.constant 0 : i32
    return %arg0, %c0_i32, %c0_i32_0 : i32, i32, i32
  }
}

</mosaic_0001>

<llo_original>
// kernel: tracklet_forward.1
$region0: #{tracklet_forward.1}
  #allocation0 [shape = 'u32[]', space=smem, size = 0x4, offset = 0x4, fixed_abs, tag = 'smem constant byte address 0x4 - core index']
  #allocation1 [shape = 'u32[144,128]{1,0:T(1,128)}', space=vmem, size = 0x12000, scoped, tag = 'internal scratch']
  #allocation2 [shape = 'f32[2,8,128]{2,1,0:T(8,128)}', space=vmem, size = 0x2000, scoped, tag = 'scratch operand']
  #allocation3 [shape = 'f32[2,8,32]{2,1,0:T(8,128)}', space=vmem, size = 0x2000, scoped, tag = 'scratch operand']
  %s0 = inlined_call_operand.vmem [shape: f32[2,8,4], index: 0, kind: input, shape index: {}]
  %s1 = inlined_call_operand.vmem [shape: f32[4,128], index: 1, kind: input, shape index: {}]
  %s2 = inlined_call_operand.vmem [shape: f32[32,128], index: 2, kind: input, shape index: {}]
  %s3 = inlined_call_operand.vmem [shape: f32[1,128], index: 3, kind: input, shape index: {}]
  %s4 = inlined_call_operand.hbm [shape: f32[32,128], index: 4, kind: input, shape index: {}]
  %s5 = inlined_call_operand.vmem [shape: f32[1,128], index: 5, kind: input, shape index: {}]
  %s6 = inlined_call_operand.vmem [shape: f32[2,4,8], index: 6, kind: input, shape index: {}]
  %s7 = inlined_call_operand.vmem [shape: f32[2,4,128], index: 7, kind: output, shape index: {}]
  %s8 = sld [smem:[#allocation0]]
  $region42: #{tracklet_forward.1} parent=0
    _
  %s10 = ssub.s32 1, %s8
  %s11 = scalar_select 0, %s10, %s8
  $region1: #{tracklet_forward.1} parent=0
    #allocation4 [shape = 'u8[16384]{0}', space=vmem, size = 0x4000, scoped, tag = 'input window, operand 4, single buffered']
    #allocation5 [shape = 's32[1]{0}', space=sflag, size = 0x4, scoped, tag = 'scoped memory for tracklet_forward.1']
    %12 = vsyncpa [#allocation5], 0
    // Predicated region
    $region2: #{tracklet_forward.1} parent=1 // pred_check
      _
    $region3: #{tracklet_forward.1} parent=1 // pred_check_branch
      %14 = sbr.rel (0) target = $region5
    $region4: #{tracklet_forward.1} parent=1 // pred_region
      _
    $region5: #{tracklet_forward.1} parent=1 // pred_fallthru
      _
    // Predicated region
    $region6: #{tracklet_forward.1} parent=1 // pred_check
      _
    $region7: #{tracklet_forward.1} parent=1 // pred_check_branch
      %16 = sbr.rel (0) target = $region9
    $region8: #{tracklet_forward.1} parent=1 // pred_region
      _
    $region9: #{tracklet_forward.1} parent=1 // pred_fallthru
      _
    // Predicated region
    $region10: #{tracklet_forward.1} parent=1 // pred_check
      _
    $region11: #{tracklet_forward.1} parent=1 // pred_check_branch
      %18 = sbr.rel (0) target = $region13
    $region12: #{tracklet_forward.1} parent=1 // pred_region
      _
    $region13: #{tracklet_forward.1} parent=1 // pred_fallthru
      _
    // Predicated region
    $region14: #{tracklet_forward.1} parent=1 // pred_check
      _
    $region15: #{tracklet_forward.1} parent=1 // pred_check_branch
      %20 = sbr.rel (0) target = $region17
    $region16: #{tracklet_forward.1} parent=1 // pred_region
      _
    $region17: #{tracklet_forward.1} parent=1 // pred_fallthru
      _
    // Predicated region
    $region18: #{tracklet_forward.1} parent=1 // pred_check
      _
    $region19: #{tracklet_forward.1} parent=1 // pred_check_branch
      %22 = sbr.rel (0) target = $region21
    $region20: #{tracklet_forward.1} parent=1 // pred_region
      %s24 = ssub.s32 512, 512
      %25 = vsyncadd [#allocation5], %s24
      %s26 = sshll.u32 [#allocation4], 4
      %s27 = int_to_ptr.vmem [resolvable:$true] %s26
      %32 = dma.hbm_to_vmem [thread:$0]  %s4, 512, %s27, [#allocation5], 128, 128, 8
    $region21: #{tracklet_forward.1} parent=1 // pred_fallthru
      _
    // Predicated region
    $region22: #{tracklet_forward.1} parent=1 // pred_check
      _
    $region23: #{tracklet_forward.1} parent=1 // pred_check_branch
      %34 = sbr.rel (0) target = $region25
    $region24: #{tracklet_forward.1} parent=1 // pred_region
      _
    $region25: #{tracklet_forward.1} parent=1 // pred_fallthru
      _
    // Predicated region
    $region26: #{tracklet_forward.1} parent=1 // pred_check
      _
    $region27: #{tracklet_forward.1} parent=1 // pred_check_branch
      %36 = sbr.rel (0) target = $region29
    $region28: #{tracklet_forward.1} parent=1 // pred_region
      _
    $region29: #{tracklet_forward.1} parent=1 // pred_fallthru
      _
    // Predicated region
    $region30: #{tracklet_forward.1} parent=1 // pred_check
      _
    $region31: #{tracklet_forward.1} parent=1 // pred_check_branch
      %38 = sbr.rel (0) target = $region33
    $region32: #{tracklet_forward.1} parent=1 // pred_region
      %39 = dma.done [#allocation5], 512
    $region33: #{tracklet_forward.1} parent=1 // pred_fallthru
      _
    %v40 = vld [vmem:[%s0] sm:$0xff]
    %v41 = vld [vmem:[%s0 + $0x8] sm:$0xff]
    %v42 = vld [vmem:[%s1] sm:$0xf]
    %v43 = vld [vmem:[%s3] sm:$0x1]
    %v45 = vlaneseq
    %v46 = vshrl.u32 %v45, 7
    %v47 = vsub.s32 0, %v46
    %v48 = vrot.slane %v43, %v47
    %vm50 = vcmask 31744
    %v52 = vsel %vm50, %v40, 0
    %v55 = vsel %vm50, %v41, 0
    %vm57 = vcmask 1043456
    %v59 = vsel %vm57, %v42, 0
    %61 = vmatprep.subr.mxu0 0.0
    %62 = vmatpush1.msra.mxu0 %v59
    %63 = vmatprep.subr.mxu0 0.0
    %64 = vmatpush1.msra.mxu0 0.0
    %65 = vmatprep.subr.mxu0 0.0
    %66 = vmatpush1.msra.mxu0 0.0
    %67 = vmatprep.subr.mxu0 0.0
    %68 = vmatpush1.msra.mxu0 0.0
    %69 = vmatprep.subr.mxu0 0.0
    %70 = vmatpush1.msra.mxu0 0.0
    %71 = vmatprep.subr.mxu0 0.0
    %72 = vmatpush1.msra.mxu0 0.0
    %73 = vmatprep.subr.mxu0 0.0
    %74 = vmatpush1.msra.mxu0 0.0
    %75 = vmatprep.subr.mxu0 0.0
    %76 = vmatpush1.msra.mxu0 0.0
    %77 = vmatprep.subr.mxu0 0.0
    %78 = vmatpush1.msra.mxu0 0.0
    %79 = vmatprep.subr.mxu0 0.0
    %80 = vmatpush1.msra.mxu0 0.0
    %81 = vmatprep.subr.mxu0 0.0
    %82 = vmatpush1.msra.mxu0 0.0
    %83 = vmatprep.subr.mxu0 0.0
    %84 = vmatpush1.msra.mxu0 0.0
    %85 = vmatprep.subr.mxu0 0.0
    %86 = vmatpush1.msra.mxu0 0.0
    %87 = vmatprep.subr.mxu0 0.0
    %88 = vmatpush1.msra.mxu0 0.0
    %89 = vmatprep.subr.mxu0 0.0
    %90 = vmatpush1.msra.mxu0 0.0
    %91 = vmatprep.subr.mxu0 0.0
    %92 = vmatpush1.msra.mxu0 0.0
    %93 = vmatprep.subr.mxu0 0.0
    %94 = vmatpush1.msra.mxu0 0.0
    %95 = vmatprep.subr.mxu0 0.0
    %96 = vmatpush1.msra.mxu0 0.0
    %97 = vmatprep.subr.mxu0 0.0
    %98 = vmatpush1.msra.mxu0 0.0
    %99 = vmatprep.subr.mxu0 0.0
    %100 = vmatpush1.msra.mxu0 0.0
    %101 = vmatprep.subr.mxu0 0.0
    %102 = vmatpush1.msra.mxu0 0.0
    %103 = vmatprep.subr.mxu0 0.0
    %104 = vmatpush1.msra.mxu0 0.0
    %105 = vmatprep.subr.mxu0 0.0
    %106 = vmatpush1.msra.mxu0 0.0
    %107 = vmatprep.subr.mxu0 0.0
    %108 = vmatpush1.msra.mxu0 0.0
    %109 = vmatprep.subr.mxu0 0.0
    %110 = vmatpush1.msra.mxu0 0.0
    %111 = vmatprep.subr.mxu0 0.0
    %112 = vmatpush1.msra.mxu0 0.0
    %113 = vmatprep.subr.mxu0 0.0
    %114 = vmatpush1.msra.mxu0 0.0
    %115 = vmatprep.subr.mxu0 0.0
    %116 = vmatpush1.msra.mxu0 0.0
    %117 = vmatprep.subr.mxu0 0.0
    %118 = vmatpush1.msra.mxu0 0.0
    %119 = vmatprep.subr.mxu0 0.0
    %120 = vmatpush1.msra.mxu0 0.0
    %121 = vmatprep.subr.mxu0 0.0
    %122 = vmatpush1.msra.mxu0 0.0
    %123 = vmatprep.subr.mxu0 0.0
    %124 = vmatpush1.msra.mxu0 0.0
    %125 = vmatprep.mubr.f32.mxu0 0.0
    %126 = vmatmul.mubr.f32.gmra.mrb[0].mxu0 %v52
    %v127 = vpop.f32.mrb[0].mxu0
    %v128 = vadd.f32 %v48, %v127
    %v129 = vpop.f32.mrb[0].mxu0
    %130 = vmatprep.mubr.f32.mxu0 0.0
    %131 = vmatmul.mubr.f32.gmra.mrb[0].mxu0 %v55
    %v132 = vpop.f32.mrb[0].mxu0
    %v133 = vadd.f32 %v48, %v132
    %v134 = vpop.f32.mrb[0].mxu0
    %135 = vdwg.mxu0
    %136 = vst [vmem:[#allocation2] sm:$0xff] %v128
    %137 = vst [vmem:[#allocation2 + $0x8] sm:$0xff] %v133
    %v138 = vld [vmem:[%s2] sm:$0xff]
    %v139 = vld [vmem:[%s2 + $0x8] sm:$0xff]
    %v140 = vld [vmem:[%s2 + $0x10] sm:$0xff]
    %v141 = vld [vmem:[%s2 + $0x18] sm:$0xff]
    %v142 = vld [vmem:[#allocation2] sm:$0x1]
    %v143 = vld [vmem:[#allocation2 + $0x8] sm:$0x1]
    %vm144 = vcmask 261120
    %v146 = vsel %vm144, 0.0, 0
    %148 = vmatprep.subr.mxu0 0.0
    %149 = vmatpush1.msra.mxu0 %v138
    %150 = vmatprep.subr.mxu0 0.0
    %151 = vmatpush1.msra.mxu0 %v139
    %152 = vmatprep.subr.mxu0 0.0
    %153 = vmatpush1.msra.mxu0 %v140
    %154 = vmatprep.subr.mxu0 0.0
    %155 = vmatpush1.msra.mxu0 %v141
    %156 = vmatprep.subr.mxu0 0.0
    %157 = vmatpush1.msra.mxu0 0.0
    %158 = vmatprep.subr.mxu0 0.0
    %159 = vmatpush1.msra.mxu0 0.0
    %160 = vmatprep.subr.mxu0 0.0
    %161 = vmatpush1.msra.mxu0 0.0
    %162 = vmatprep.subr.mxu0 0.0
    %163 = vmatpush1.msra.mxu0 0.0
    %164 = vmatprep.subr.mxu0 0.0
    %165 = vmatpush1.msra.mxu0 0.0
    %166 = vmatprep.subr.mxu0 0.0
    %167 = vmatpush1.msra.mxu0 0.0
    %168 = vmatprep.subr.mxu0 0.0
    %169 = vmatpush1.msra.mxu0 0.0
    %170 = vmatprep.subr.mxu0 0.0
    %171 = vmatpush1.msra.mxu0 0.0
    %172 = vmatprep.subr.mxu0 0.0
    %173 = vmatpush1.msra.mxu0 0.0
    %174 = vmatprep.subr.mxu0 0.0
    %175 = vmatpush1.msra.mxu0 0.0
    %176 = vmatprep.subr.mxu0 0.0
    %177 = vmatpush1.msra.mxu0 0.0
    %178 = vmatprep.subr.mxu0 0.0
    %179 = vmatpush1.msra.mxu0 0.0
    %180 = vmatprep.subr.mxu0 0.0
    %181 = vmatpush1.msra.mxu0 0.0
    %182 = vmatprep.subr.mxu0 0.0
    %183 = vmatpush1.msra.mxu0 0.0
    %184 = vmatprep.subr.mxu0 0.0
    %185 = vmatpush1.msra.mxu0 0.0
    %186 = vmatprep.subr.mxu0 0.0
    %187 = vmatpush1.msra.mxu0 0.0
    %188 = vmatprep.subr.mxu0 0.0
    %189 = vmatpush1.msra.mxu0 0.0
    %190 = vmatprep.subr.mxu0 0.0
    %191 = vmatpush1.msra.mxu0 0.0
    %192 = vmatprep.subr.mxu0 0.0
    %193 = vmatpush1.msra.mxu0 0.0
    %194 = vmatprep.subr.mxu0 0.0
    %195 = vmatpush1.msra.mxu0 0.0
    %196 = vmatprep.subr.mxu0 0.0
    %197 = vmatpush1.msra.mxu0 0.0
    %198 = vmatprep.subr.mxu0 0.0
    %199 = vmatpush1.msra.mxu0 0.0
    %200 = vmatprep.subr.mxu0 0.0
    %201 = vmatpush1.msra.mxu0 0.0
    %202 = vmatprep.subr.mxu0 0.0
    %203 = vmatpush1.msra.mxu0 0.0
    %204 = vmatprep.subr.mxu0 0.0
    %205 = vmatpush1.msra.mxu0 0.0
    %206 = vmatprep.subr.mxu0 0.0
    %207 = vmatpush1.msra.mxu0 0.0
    %208 = vmatprep.subr.mxu0 0.0
    %209 = vmatpush1.msra.mxu0 0.0
    %210 = vmatprep.subr.mxu0 0.0
    %211 = vmatpush1.msra.mxu0 0.0
    %212 = vmatprep.mubr.f32.mxu0 0.0
    %213 = vmatmul.mubr.f32.gmra.mrb[0].mxu0 %v146
    %v214 = vpop.f32.mrb[0].mxu0
    %v215 = vadd.f32 0.0, %v214
    %v216 = vpop.f32.mrb[0].mxu0
    %217 = vdwg.mxu0
    %v219 = vrot.slane %v215, 1
    %v222 = vadd.f32 %v142, %v215
    %v223 = vadd.f32 %v143, %v219
    %v224 = vmul.f32 %v222, 0.5
    %v225 = vmul.f32 %v223, 0.5
    %v226 = vtanh.pop %v224
    %v227 = vtanh.pop %v225
    %v228 = vmul.f32 %v226, 0.5
    %v229 = vmul.f32 %v227, 0.5
    %v230 = vadd.f32 %v228, 0.5
    %v231 = vadd.f32 %v229, 0.5
    %v232 = vtanh.pop %v222
    %v233 = vtanh.pop %v223
    %v234 = vmul.f32 %v230, 0.0
    %v235 = vmul.f32 %v231, 0.0
    %238 = vrot.lane.b32.xlu0 %v232, 64
    %v239 = vpop.permute.xlu0 %238
    %240 = vrot.lane.b32.xlu0 %v233, 64
    %v241 = vpop.permute.xlu0 %240
    %v244 = vmul.f32 %v230, %v239
    %v245 = vmul.f32 %v231, %v241
    %248 = vrot.lane.b32.xlu0 %v244, 32
    %v249 = vpop.permute.xlu0 %248
    %250 = vrot.lane.b32.xlu0 %v245, 32
    %v251 = vpop.permute.xlu0 %250
    %v254 = vadd.f32 %v234, %v249
    %v255 = vadd.f32 %v235, %v251
    %v256 = vtanh.pop %v254
    %v257 = vtanh.pop %v255
    %260 = vrot.lane.b32.xlu0 %v256, 64
    %v261 = vpop.permute.xlu0 %260
    %262 = vrot.lane.b32.xlu0 %v257, 64
    %v263 = vpop.permute.xlu0 %262
    %v266 = vmul.f32 %v230, %v261
    %v267 = vmul.f32 %v231, %v263
    %270 = vrot.lane.b32.xlu0 %v266, 32
    %v271 = vpop.permute.xlu0 %270
    %272 = vrot.lane.b32.xlu0 %v267, 32
    %v273 = vpop.permute.xlu0 %272
    %vm276 = vcmask 253952
    %277 = vst.msk [vmem:[#allocation3] sm:$0x1] %vm276, %v271
    %278 = vst.msk [vmem:[#allocation3 + $0x8] sm:$0x1] %vm276, %v273
    %v279 = vld [vmem:[#allocation2 + $0x1] sm:$0x1]
    %v280 = vld [vmem:[#allocation2 + $0x9] sm:$0x1]
    %v281 = vrot.slane %v267, 7
    %vm282 = vcmask 1041409
    %v283 = vsel %vm282, %v281, %v266
    %284 = vrot.lane.b32.xlu0 %v283, 32
    %v285 = vpop.permute.xlu0 %284
    %v286 = vsel %vm144, %v285, 0
    %288 = vmatprep.subr.mxu0 0.0
    %289 = vmatpush1.msra.mxu0 %v138
    %290 = vmatprep.subr.mxu0 0.0
    %291 = vmatpush1.msra.mxu0 %v139
    %292 = vmatprep.subr.mxu0 0.0
    %293 = vmatpush1.msra.mxu0 %v140
    %294 = vmatprep.subr.mxu0 0.0
    %295 = vmatpush1.msra.mxu0 %v141
    %296 = vmatprep.subr.mxu0 0.0
    %297 = vmatpush1.msra.mxu0 0.0
    %298 = vmatprep.subr.mxu0 0.0
    %299 = vmatpush1.msra.mxu0 0.0
    %300 = vmatprep.subr.mxu0 0.0
    %301 = vmatpush1.msra.mxu0 0.0
    %302 = vmatprep.subr.mxu0 0.0
    %303 = vmatpush1.msra.mxu0 0.0
    %304 = vmatprep.subr.mxu0 0.0
    %305 = vmatpush1.msra.mxu0 0.0
    %306 = vmatprep.subr.mxu0 0.0
    %307 = vmatpush1.msra.mxu0 0.0
    %308 = vmatprep.subr.mxu0 0.0
    %309 = vmatpush1.msra.mxu0 0.0
    %310 = vmatprep.subr.mxu0 0.0
    %311 = vmatpush1.msra.mxu0 0.0
    %312 = vmatprep.subr.mxu0 0.0
    %313 = vmatpush1.msra.mxu0 0.0
    %314 = vmatprep.subr.mxu0 0.0
    %315 = vmatpush1.msra.mxu0 0.0
    %316 = vmatprep.subr.mxu0 0.0
    %317 = vmatpush1.msra.mxu0 0.0
    %318 = vmatprep.subr.mxu0 0.0
    %319 = vmatpush1.msra.mxu0 0.0
    %320 = vmatprep.subr.mxu0 0.0
    %321 = vmatpush1.msra.mxu0 0.0
    %322 = vmatprep.subr.mxu0 0.0
    %323 = vmatpush1.msra.mxu0 0.0
    %324 = vmatprep.subr.mxu0 0.0
    %325 = vmatpush1.msra.mxu0 0.0
    %326 = vmatprep.subr.mxu0 0.0
    %327 = vmatpush1.msra.mxu0 0.0
    %328 = vmatprep.subr.mxu0 0.0
    %329 = vmatpush1.msra.mxu0 0.0
    %330 = vmatprep.subr.mxu0 0.0
    %331 = vmatpush1.msra.mxu0 0.0
    %332 = vmatprep.subr.mxu0 0.0
    %333 = vmatpush1.msra.mxu0 0.0
    %334 = vmatprep.subr.mxu0 0.0
    %335 = vmatpush1.msra.mxu0 0.0
    %336 = vmatprep.subr.mxu0 0.0
    %337 = vmatpush1.msra.mxu0 0.0
    %338 = vmatprep.subr.mxu0 0.0
    %339 = vmatpush1.msra.mxu0 0.0
    %340 = vmatprep.subr.mxu0 0.0
    %341 = vmatpush1.msra.mxu0 0.0
    %342 = vmatprep.subr.mxu0 0.0
    %343 = vmatpush1.msra.mxu0 0.0
    %344 = vmatprep.subr.mxu0 0.0
    %345 = vmatpush1.msra.mxu0 0.0
    %346 = vmatprep.subr.mxu0 0.0
    %347 = vmatpush1.msra.mxu0 0.0
    %348 = vmatprep.subr.mxu0 0.0
    %349 = vmatpush1.msra.mxu0 0.0
    %350 = vmatprep.subr.mxu0 0.0
    %351 = vmatpush1.msra.mxu0 0.0
    %352 = vmatprep.mubr.f32.mxu0 0.0
    %353 = vmatmul.mubr.f32.gmra.mrb[0].mxu0 %v286
    %v354 = vpop.f32.mrb[0].mxu0
    %v355 = vadd.f32 0.0, %v354
    %v356 = vpop.f32.mrb[0].mxu0
    %357 = vdwg.mxu0
    %v359 = vrot.slane %v355, 1
    %v362 = vadd.f32 %v279, %v355
    %v363 = vadd.f32 %v280, %v359
    %v364 = vmul.f32 %v362, 0.5
    %v365 = vmul.f32 %v363, 0.5
    %v366 = vtanh.pop %v364
    %v367 = vtanh.pop %v365
    %v368 = vmul.f32 %v366, 0.5
    %v369 = vmul.f32 %v367, 0.5
    %v370 = vadd.f32 %v368, 0.5
    %v371 = vadd.f32 %v369, 0.5
    %v372 = vtanh.pop %v362
    %v373 = vtanh.pop %v363
    %v374 = vmul.f32 %v370, %v254
    %v375 = vmul.f32 %v371, %v255
    %378 = vrot.lane.b32.xlu0 %v372, 64
    %v379 = vpop.permute.xlu0 %378
    %380 = vrot.lane.b32.xlu0 %v373, 64
    %v381 = vpop.permute.xlu0 %380
    %v384 = vmul.f32 %v370, %v379
    %v385 = vmul.f32 %v371, %v381
    %388 = vrot.lane.b32.xlu0 %v384, 32
    %v389 = vpop.permute.xlu0 %388
    %390 = vrot.lane.b32.xlu0 %v385, 32
    %v391 = vpop.permute.xlu0 %390
    %v394 = vadd.f32 %v374, %v389
    %v395 = vadd.f32 %v375, %v391
    %v396 = vtanh.pop %v394
    %v397 = vtanh.pop %v395
    %400 = vrot.lane.b32.xlu0 %v396, 64
    %v401 = vpop.permute.xlu0 %400
    %402 = vrot.lane.b32.xlu0 %v397, 64
    %v403 = vpop.permute.xlu0 %402
    %v406 = vmul.f32 %v370, %v401
    %v407 = vmul.f32 %v371, %v403
    %410 = vrot.lane.b32.xlu0 %v406, 32
    %v411 = vpop.permute.xlu0 %410
    %412 = vrot.lane.b32.xlu0 %v407, 32
    %v413 = vpop.permute.xlu0 %412
    %416 = vst.msk [vmem:[#allocation3 + $0x1] sm:$0x1] %vm276, %v411
    %417 = vst.msk [vmem:[#allocation3 + $0x9] sm:$0x1] %vm276, %v413
    %v418 = vld [vmem:[#allocation2 + $0x2] sm:$0x1]
    %v419 = vld [vmem:[#allocation2 + $0xa] sm:$0x1]
    %v420 = vrot.slane %v407, 7
    %v421 = vsel %vm282, %v420, %v406
    %422 = vrot.lane.b32.xlu0 %v421, 32
    %v423 = vpop.permute.xlu0 %422
    %v424 = vsel %vm144, %v423, 0
    %426 = vmatprep.subr.mxu0 0.0
    %427 = vmatpush1.msra.mxu0 %v138
    %428 = vmatprep.subr.mxu0 0.0
    %429 = vmatpush1.msra.mxu0 %v139
    %430 = vmatprep.subr.mxu0 0.0
    %431 = vmatpush1.msra.mxu0 %v140
    %432 = vmatprep.subr.mxu0 0.0
    %433 = vmatpush1.msra.mxu0 %v141
    %434 = vmatprep.subr.mxu0 0.0
    %435 = vmatpush1.msra.mxu0 0.0
    %436 = vmatprep.subr.mxu0 0.0
    %437 = vmatpush1.msra.mxu0 0.0
    %438 = vmatprep.subr.mxu0 0.0
    %439 = vmatpush1.msra.mxu0 0.0
    %440 = vmatprep.subr.mxu0 0.0
    %441 = vmatpush1.msra.mxu0 0.0
    %442 = vmatprep.subr.mxu0 0.0
    %443 = vmatpush1.msra.mxu0 0.0
    %444 = vmatprep.subr.mxu0 0.0
    %445 = vmatpush1.msra.mxu0 0.0
    %446 = vmatprep.subr.mxu0 0.0
    %447 = vmatpush1.msra.mxu0 0.0
    %448 = vmatprep.subr.mxu0 0.0
    %449 = vmatpush1.msra.mxu0 0.0
    %450 = vmatprep.subr.mxu0 0.0
    %451 = vmatpush1.msra.mxu0 0.0
    %452 = vmatprep.subr.mxu0 0.0
    %453 = vmatpush1.msra.mxu0 0.0
    %454 = vmatprep.subr.mxu0 0.0
    %455 = vmatpush1.msra.mxu0 0.0
    %456 = vmatprep.subr.mxu0 0.0
    %457 = vmatpush1.msra.mxu0 0.0
    %458 = vmatprep.subr.mxu0 0.0
    %459 = vmatpush1.msra.mxu0 0.0
    %460 = vmatprep.subr.mxu0 0.0
    %461 = vmatpush1.msra.mxu0 0.0
    %462 = vmatprep.subr.mxu0 0.0
    %463 = vmatpush1.msra.mxu0 0.0
    %464 = vmatprep.subr.mxu0 0.0
    %465 = vmatpush1.msra.mxu0 0.0
    %466 = vmatprep.subr.mxu0 0.0
    %467 = vmatpush1.msra.mxu0 0.0
    %468 = vmatprep.subr.mxu0 0.0
    %469 = vmatpush1.msra.mxu0 0.0
    %470 = vmatprep.subr.mxu0 0.0
    %471 = vmatpush1.msra.mxu0 0.0
    %472 = vmatprep.subr.mxu0 0.0
    %473 = vmatpush1.msra.mxu0 0.0
    %474 = vmatprep.subr.mxu0 0.0
    %475 = vmatpush1.msra.mxu0 0.0
    %476 = vmatprep.subr.mxu0 0.0
    %477 = vmatpush1.msra.mxu0 0.0
    %478 = vmatprep.subr.mxu0 0.0
    %479 = vmatpush1.msra.mxu0 0.0
    %480 = vmatprep.subr.mxu0 0.0
    %481 = vmatpush1.msra.mxu0 0.0
    %482 = vmatprep.subr.mxu0 0.0
    %483 = vmatpush1.msra.mxu0 0.0
    %484 = vmatprep.subr.mxu0 0.0
    %485 = vmatpush1.msra.mxu0 0.0
    %486 = vmatprep.subr.mxu0 0.0
    %487 = vmatpush1.msra.mxu0 0.0
    %488 = vmatprep.subr.mxu0 0.0
    %489 = vmatpush1.msra.mxu0 0.0
    %490 = vmatprep.mubr.f32.mxu0 0.0
    %491 = vmatmul.mubr.f32.gmra.mrb[0].mxu0 %v424
    %v492 = vpop.f32.mrb[0].mxu0
    %v493 = vadd.f32 0.0, %v492
    %v494 = vpop.f32.mrb[0].mxu0
    %495 = vdwg.mxu0
    %v497 = vrot.slane %v493, 1
    %v500 = vadd.f32 %v418, %v493
    %v501 = vadd.f32 %v419, %v497
    %v502 = vmul.f32 %v500, 0.5
    %v503 = vmul.f32 %v501, 0.5
    %v504 = vtanh.pop %v502
    %v505 = vtanh.pop %v503
    %v506 = vmul.f32 %v504, 0.5
    %v507 = vmul.f32 %v505, 0.5
    %v508 = vadd.f32 %v506, 0.5
    %v509 = vadd.f32 %v507, 0.5
    %v510 = vtanh.pop %v500
    %v511 = vtanh.pop %v501
    %v512 = vmul.f32 %v508, %v394
    %v513 = vmul.f32 %v509, %v395
    %516 = vrot.lane.b32.xlu0 %v510, 64
    %v517 = vpop.permute.xlu0 %516
    %518 = vrot.lane.b32.xlu0 %v511, 64
    %v519 = vpop.permute.xlu0 %518
    %v522 = vmul.f32 %v508, %v517
    %v523 = vmul.f32 %v509, %v519
    %526 = vrot.lane.b32.xlu0 %v522, 32
    %v527 = vpop.permute.xlu0 %526
    %528 = vrot.lane.b32.xlu0 %v523, 32
    %v529 = vpop.permute.xlu0 %528
    %v532 = vadd.f32 %v512, %v527
    %v533 = vadd.f32 %v513, %v529
    %v534 = vtanh.pop %v532
    %v535 = vtanh.pop %v533
    %538 = vrot.lane.b32.xlu0 %v534, 64
    %v539 = vpop.permute.xlu0 %538
    %540 = vrot.lane.b32.xlu0 %v535, 64
    %v541 = vpop.permute.xlu0 %540
    %v544 = vmul.f32 %v508, %v539
    %v545 = vmul.f32 %v509, %v541
    %548 = vrot.lane.b32.xlu0 %v544, 32
    %v549 = vpop.permute.xlu0 %548
    %550 = vrot.lane.b32.xlu0 %v545, 32
    %v551 = vpop.permute.xlu0 %550
    %554 = vst.msk [vmem:[#allocation3 + $0x2] sm:$0x1] %vm276, %v549
    %555 = vst.msk [vmem:[#allocation3 + $0xa] sm:$0x1] %vm276, %v551
    %v556 = vld [vmem:[#allocation2 + $0x3] sm:$0x1]
    %v557 = vld [vmem:[#allocation2 + $0xb] sm:$0x1]
    %v558 = vrot.slane %v545, 7
    %v559 = vsel %vm282, %v558, %v544
    %560 = vrot.lane.b32.xlu0 %v559, 32
    %v561 = vpop.permute.xlu0 %560
    %v562 = vsel %vm144, %v561, 0
    %564 = vmatprep.subr.mxu0 0.0
    %565 = vmatpush1.msra.mxu0 %v138
    %566 = vmatprep.subr.mxu0 0.0
    %567 = vmatpush1.msra.mxu0 %v139
    %568 = vmatprep.subr.mxu0 0.0
    %569 = vmatpush1.msra.mxu0 %v140
    %570 = vmatprep.subr.mxu0 0.0
    %571 = vmatpush1.msra.mxu0 %v141
    %572 = vmatprep.subr.mxu0 0.0
    %573 = vmatpush1.msra.mxu0 0.0
    %574 = vmatprep.subr.mxu0 0.0
    %575 = vmatpush1.msra.mxu0 0.0
    %576 = vmatprep.subr.mxu0 0.0
    %577 = vmatpush1.msra.mxu0 0.0
    %578 = vmatprep.subr.mxu0 0.0
    %579 = vmatpush1.msra.mxu0 0.0
    %580 = vmatprep.subr.mxu0 0.0
    %581 = vmatpush1.msra.mxu0 0.0
    %582 = vmatprep.subr.mxu0 0.0
    %583 = vmatpush1.msra.mxu0 0.0
    %584 = vmatprep.subr.mxu0 0.0
    %585 = vmatpush1.msra.mxu0 0.0
    %586 = vmatprep.subr.mxu0 0.0
    %587 = vmatpush1.msra.mxu0 0.0
    %588 = vmatprep.subr.mxu0 0.0
    %589 = vmatpush1.msra.mxu0 0.0
    %590 = vmatprep.subr.mxu0 0.0
    %591 = vmatpush1.msra.mxu0 0.0
    %592 = vmatprep.subr.mxu0 0.0
    %593 = vmatpush1.msra.mxu0 0.0
    %594 = vmatprep.subr.mxu0 0.0
    %595 = vmatpush1.msra.mxu0 0.0
    %596 = vmatprep.subr.mxu0 0.0
    %597 = vmatpush1.msra.mxu0 0.0
    %598 = vmatprep.subr.mxu0 0.0
    %599 = vmatpush1.msra.mxu0 0.0
    %600 = vmatprep.subr.mxu0 0.0
    %601 = vmatpush1.msra.mxu0 0.0
    %602 = vmatprep.subr.mxu0 0.0
    %603 = vmatpush1.msra.mxu0 0.0
    %604 = vmatprep.subr.mxu0 0.0
    %605 = vmatpush1.msra.mxu0 0.0
    %606 = vmatprep.subr.mxu0 0.0
    %607 = vmatpush1.msra.mxu0 0.0
    %608 = vmatprep.subr.mxu0 0.0
    %609 = vmatpush1.msra.mxu0 0.0
    %610 = vmatprep.subr.mxu0 0.0
    %611 = vmatpush1.msra.mxu0 0.0
    %612 = vmatprep.subr.mxu0 0.0
    %613 = vmatpush1.msra.mxu0 0.0
    %614 = vmatprep.subr.mxu0 0.0
    %615 = vmatpush1.msra.mxu0 0.0
    %616 = vmatprep.subr.mxu0 0.0
    %617 = vmatpush1.msra.mxu0 0.0
    %618 = vmatprep.subr.mxu0 0.0
    %619 = vmatpush1.msra.mxu0 0.0
    %620 = vmatprep.subr.mxu0 0.0
    %621 = vmatpush1.msra.mxu0 0.0
    %622 = vmatprep.subr.mxu0 0.0
    %623 = vmatpush1.msra.mxu0 0.0
    %624 = vmatprep.subr.mxu0 0.0
    %625 = vmatpush1.msra.mxu0 0.0
    %626 = vmatprep.subr.mxu0 0.0
    %627 = vmatpush1.msra.mxu0 0.0
    %628 = vmatprep.mubr.f32.mxu0 0.0
    %629 = vmatmul.mubr.f32.gmra.mrb[0].mxu0 %v562
    %v630 = vpop.f32.mrb[0].mxu0
    %v631 = vadd.f32 0.0, %v630
    %v632 = vpop.f32.mrb[0].mxu0
    %633 = vdwg.mxu0
    %v635 = vrot.slane %v631, 1
    %v638 = vadd.f32 %v556, %v631
    %v639 = vadd.f32 %v557, %v635
    %v640 = vmul.f32 %v638, 0.5
    %v641 = vmul.f32 %v639, 0.5
    %v642 = vtanh.pop %v640
    %v643 = vtanh.pop %v641
    %v644 = vmul.f32 %v642, 0.5
    %v645 = vmul.f32 %v643, 0.5
    %v646 = vadd.f32 %v644, 0.5
    %v647 = vadd.f32 %v645, 0.5
    %v648 = vtanh.pop %v638
    %v649 = vtanh.pop %v639
    %v650 = vmul.f32 %v646, %v532
    %v651 = vmul.f32 %v647, %v533
    %654 = vrot.lane.b32.xlu0 %v648, 64
    %v655 = vpop.permute.xlu0 %654
    %656 = vrot.lane.b32.xlu0 %v649, 64
    %v657 = vpop.permute.xlu0 %656
    %v660 = vmul.f32 %v646, %v655
    %v661 = vmul.f32 %v647, %v657
    %664 = vrot.lane.b32.xlu0 %v660, 32
    %v665 = vpop.permute.xlu0 %664
    %666 = vrot.lane.b32.xlu0 %v661, 32
    %v667 = vpop.permute.xlu0 %666
    %v670 = vadd.f32 %v650, %v665
    %v671 = vadd.f32 %v651, %v667
    %v672 = vtanh.pop %v670
    %v673 = vtanh.pop %v671
    %676 = vrot.lane.b32.xlu0 %v672, 64
    %v677 = vpop.permute.xlu0 %676
    %678 = vrot.lane.b32.xlu0 %v673, 64
    %v679 = vpop.permute.xlu0 %678
    %v682 = vmul.f32 %v646, %v677
    %v683 = vmul.f32 %v647, %v679
    %686 = vrot.lane.b32.xlu0 %v682, 32
    %v687 = vpop.permute.xlu0 %686
    %688 = vrot.lane.b32.xlu0 %v683, 32
    %v689 = vpop.permute.xlu0 %688
    %692 = vst.msk [vmem:[#allocation3 + $0x3] sm:$0x1] %vm276, %v687
    %693 = vst.msk [vmem:[#allocation3 + $0xb] sm:$0x1] %vm276, %v689
    %v694 = vld [vmem:[#allocation2 + $0x4] sm:$0x1]
    %v695 = vld [vmem:[#allocation2 + $0xc] sm:$0x1]
    %v696 = vrot.slane %v683, 7
    %v697 = vsel %vm282, %v696, %v682
    %698 = vrot.lane.b32.xlu0 %v697, 32
    %v699 = vpop.permute.xlu0 %698
    %v700 = vsel %vm144, %v699, 0
    %702 = vmatprep.subr.mxu0 0.0
    %703 = vmatpush1.msra.mxu0 %v138
    %704 = vmatprep.subr.mxu0 0.0
    %705 = vmatpush1.msra.mxu0 %v139
    %706 = vmatprep.subr.mxu0 0.0
    %707 = vmatpush1.msra.mxu0 %v140
    %708 = vmatprep.subr.mxu0 0.0
    %709 = vmatpush1.msra.mxu0 %v141
    %710 = vmatprep.subr.mxu0 0.0
    %711 = vmatpush1.msra.mxu0 0.0
    %712 = vmatprep.subr.mxu0 0.0
    %713 = vmatpush1.msra.mxu0 0.0
    %714 = vmatprep.subr.mxu0 0.0
    %715 = vmatpush1.msra.mxu0 0.0
    %716 = vmatprep.subr.mxu0 0.0
    %717 = vmatpush1.msra.mxu0 0.0
    %718 = vmatprep.subr.mxu0 0.0
    %719 = vmatpush1.msra.mxu0 0.0
    %720 = vmatprep.subr.mxu0 0.0
    %721 = vmatpush1.msra.mxu0 0.0
    %722 = vmatprep.subr.mxu0 0.0
    %723 = vmatpush1.msra.mxu0 0.0
    %724 = vmatprep.subr.mxu0 0.0
    %725 = vmatpush1.msra.mxu0 0.0
    %726 = vmatprep.subr.mxu0 0.0
    %727 = vmatpush1.msra.mxu0 0.0
    %728 = vmatprep.subr.mxu0 0.0
    %729 = vmatpush1.msra.mxu0 0.0
    %730 = vmatprep.subr.mxu0 0.0
    %731 = vmatpush1.msra.mxu0 0.0
    %732 = vmatprep.subr.mxu0 0.0
    %733 = vmatpush1.msra.mxu0 0.0
    %734 = vmatprep.subr.mxu0 0.0
    %735 = vmatpush1.msra.mxu0 0.0
    %736 = vmatprep.subr.mxu0 0.0
    %737 = vmatpush1.msra.mxu0 0.0
    %738 = vmatprep.subr.mxu0 0.0
    %739 = vmatpush1.msra.mxu0 0.0
    %740 = vmatprep.subr.mxu0 0.0
    %741 = vmatpush1.msra.mxu0 0.0
    %742 = vmatprep.subr.mxu0 0.0
    %743 = vmatpush1.msra.mxu0 0.0
    %744 = vmatprep.subr.mxu0 0.0
    %745 = vmatpush1.msra.mxu0 0.0
    %746 = vmatprep.subr.mxu0 0.0
    %747 = vmatpush1.msra.mxu0 0.0
    %748 = vmatprep.subr.mxu0 0.0
    %749 = vmatpush1.msra.mxu0 0.0
    %750 = vmatprep.subr.mxu0 0.0
    %751 = vmatpush1.msra.mxu0 0.0
    %752 = vmatprep.subr.mxu0 0.0
    %753 = vmatpush1.msra.mxu0 0.0
    %754 = vmatprep.subr.mxu0 0.0
    %755 = vmatpush1.msra.mxu0 0.0
    %756 = vmatprep.subr.mxu0 0.0
    %757 = vmatpush1.msra.mxu0 0.0
    %758 = vmatprep.subr.mxu0 0.0
    %759 = vmatpush1.msra.mxu0 0.0
    %760 = vmatprep.subr.mxu0 0.0
    %761 = vmatpush1.msra.mxu0 0.0
    %762 = vmatprep.subr.mxu0 0.0
    %763 = vmatpush1.msra.mxu0 0.0
    %764 = vmatprep.subr.mxu0 0.0
    %765 = vmatpush1.msra.mxu0 0.0
    %766 = vmatprep.mubr.f32.mxu0 0.0
    %767 = vmatmul.mubr.f32.gmra.mrb[0].mxu0 %v700
    %v768 = vpop.f32.mrb[0].mxu0
    %v769 = vadd.f32 0.0, %v768
    %v770 = vpop.f32.mrb[0].mxu0
    %771 = vdwg.mxu0
    %v773 = vrot.slane %v769, 1
    %v776 = vadd.f32 %v694, %v769
    %v777 = vadd.f32 %v695, %v773
    %v778 = vmul.f32 %v776, 0.5
    %v779 = vmul.f32 %v777, 0.5
    %v780 = vtanh.pop %v778
    %v781 = vtanh.pop %v779
    %v782 = vmul.f32 %v780, 0.5
    %v783 = vmul.f32 %v781, 0.5
    %v784 = vadd.f32 %v782, 0.5
    %v785 = vadd.f32 %v783, 0.5
    %v786 = vtanh.pop %v776
    %v787 = vtanh.pop %v777
    %v788 = vmul.f32 %v784, %v670
    %v789 = vmul.f32 %v785, %v671
    %792 = vrot.lane.b32.xlu0 %v786, 64
    %v793 = vpop.permute.xlu0 %792
    %794 = vrot.lane.b32.xlu0 %v787, 64
    %v795 = vpop.permute.xlu0 %794
    %v798 = vmul.f32 %v784, %v793
    %v799 = vmul.f32 %v785, %v795
    %802 = vrot.lane.b32.xlu0 %v798, 32
    %v803 = vpop.permute.xlu0 %802
    %804 = vrot.lane.b32.xlu0 %v799, 32
    %v805 = vpop.permute.xlu0 %804
    %v808 = vadd.f32 %v788, %v803
    %v809 = vadd.f32 %v789, %v805
    %v810 = vtanh.pop %v808
    %v811 = vtanh.pop %v809
    %814 = vrot.lane.b32.xlu0 %v810, 64
    %v815 = vpop.permute.xlu0 %814
    %816 = vrot.lane.b32.xlu0 %v811, 64
    %v817 = vpop.permute.xlu0 %816
    %v820 = vmul.f32 %v784, %v815
    %v821 = vmul.f32 %v785, %v817
    %824 = vrot.lane.b32.xlu0 %v820, 32
    %v825 = vpop.permute.xlu0 %824
    %826 = vrot.lane.b32.xlu0 %v821, 32
    %v827 = vpop.permute.xlu0 %826
    %830 = vst.msk [vmem:[#allocation3 + $0x4] sm:$0x1] %vm276, %v825
    %831 = vst.msk [vmem:[#allocation3 + $0xc] sm:$0x1] %vm276, %v827
    %v832 = vld [vmem:[#allocation2 + $0x5] sm:$0x1]
    %v833 = vld [vmem:[#allocation2 + $0xd] sm:$0x1]
    %v834 = vrot.slane %v821, 7
    %v835 = vsel %vm282, %v834, %v820
    %836 = vrot.lane.b32.xlu0 %v835, 32
    %v837 = vpop.permute.xlu0 %836
    %v838 = vsel %vm144, %v837, 0
    %840 = vmatprep.subr.mxu0 0.0
    %841 = vmatpush1.msra.mxu0 %v138
    %842 = vmatprep.subr.mxu0 0.0
    %843 = vmatpush1.msra.mxu0 %v139
    %844 = vmatprep.subr.mxu0 0.0
    %845 = vmatpush1.msra.mxu0 %v140
    %846 = vmatprep.subr.mxu0 0.0
    %847 = vmatpush1.msra.mxu0 %v141
    %848 = vmatprep.subr.mxu0 0.0
    %849 = vmatpush1.msra.mxu0 0.0
    %850 = vmatprep.subr.mxu0 0.0
    %851 = vmatpush1.msra.mxu0 0.0
    %852 = vmatprep.subr.mxu0 0.0
    %853 = vmatpush1.msra.mxu0 0.0
    %854 = vmatprep.subr.mxu0 0.0
    %855 = vmatpush1.msra.mxu0 0.0
    %856 = vmatprep.subr.mxu0 0.0
    %857 = vmatpush1.msra.mxu0 0.0
    %858 = vmatprep.subr.mxu0 0.0
    %859 = vmatpush1.msra.mxu0 0.0
    %860 = vmatprep.subr.mxu0 0.0
    %861 = vmatpush1.msra.mxu0 0.0
    %862 = vmatprep.subr.mxu0 0.0
    %863 = vmatpush1.msra.mxu0 0.0
    %864 = vmatprep.subr.mxu0 0.0
    %865 = vmatpush1.msra.mxu0 0.0
    %866 = vmatprep.subr.mxu0 0.0
    %867 = vmatpush1.msra.mxu0 0.0
    %868 = vmatprep.subr.mxu0 0.0
    %869 = vmatpush1.msra.mxu0 0.0
    %870 = vmatprep.subr.mxu0 0.0
    %871 = vmatpush1.msra.mxu0 0.0
    %872 = vmatprep.subr.mxu0 0.0
    %873 = vmatpush1.msra.mxu0 0.0
    %874 = vmatprep.subr.mxu0 0.0
    %875 = vmatpush1.msra.mxu0 0.0
    %876 = vmatprep.subr.mxu0 0.0
    %877 = vmatpush1.msra.mxu0 0.0
    %878 = vmatprep.subr.mxu0 0.0
    %879 = vmatpush1.msra.mxu0 0.0
    %880 = vmatprep.subr.mxu0 0.0
    %881 = vmatpush1.msra.mxu0 0.0
    %882 = vmatprep.subr.mxu0 0.0
    %883 = vmatpush1.msra.mxu0 0.0
    %884 = vmatprep.subr.mxu0 0.0
    %885 = vmatpush1.msra.mxu0 0.0
    %886 = vmatprep.subr.mxu0 0.0
    %887 = vmatpush1.msra.mxu0 0.0
    %888 = vmatprep.subr.mxu0 0.0
    %889 = vmatpush1.msra.mxu0 0.0
    %890 = vmatprep.subr.mxu0 0.0
    %891 = vmatpush1.msra.mxu0 0.0
    %892 = vmatprep.subr.mxu0 0.0
    %893 = vmatpush1.msra.mxu0 0.0
    %894 = vmatprep.subr.mxu0 0.0
    %895 = vmatpush1.msra.mxu0 0.0
    %896 = vmatprep.subr.mxu0 0.0
    %897 = vmatpush1.msra.mxu0 0.0
    %898 = vmatprep.subr.mxu0 0.0
    %899 = vmatpush1.msra.mxu0 0.0
    %900 = vmatprep.subr.mxu0 0.0
    %901 = vmatpush1.msra.mxu0 0.0
    %902 = vmatprep.subr.mxu0 0.0
    %903 = vmatpush1.msra.mxu0 0.0
    %904 = vmatprep.mubr.f32.mxu0 0.0
    %905 = vmatmul.mubr.f32.gmra.mrb[0].mxu0 %v838
    %v906 = vpop.f32.mrb[0].mxu0
    %v907 = vadd.f32 0.0, %v906
    %v908 = vpop.f32.mrb[0].mxu0
    %909 = vdwg.mxu0
    %v911 = vrot.slane %v907, 1
    %v914 = vadd.f32 %v832, %v907
    %v915 = vadd.f32 %v833, %v911
    %v916 = vmul.f32 %v914, 0.5
    %v917 = vmul.f32 %v915, 0.5
    %v918 = vtanh.pop %v916
    %v919 = vtanh.pop %v917
    %v920 = vmul.f32 %v918, 0.5
    %v921 = vmul.f32 %v919, 0.5
    %v922 = vadd.f32 %v920, 0.5
    %v923 = vadd.f32 %v921, 0.5
    %v924 = vtanh.pop %v914
    %v925 = vtanh.pop %v915
    %v926 = vmul.f32 %v922, %v808
    %v927 = vmul.f32 %v923, %v809
    %930 = vrot.lane.b32.xlu0 %v924, 64
    %v931 = vpop.permute.xlu0 %930
    %932 = vrot.lane.b32.xlu0 %v925, 64
    %v933 = vpop.permute.xlu0 %932
    %v936 = vmul.f32 %v922, %v931
    %v937 = vmul.f32 %v923, %v933
    %940 = vrot.lane.b32.xlu0 %v936, 32
    %v941 = vpop.permute.xlu0 %940
    %942 = vrot.lane.b32.xlu0 %v937, 32
    %v943 = vpop.permute.xlu0 %942
    %v946 = vadd.f32 %v926, %v941
    %v947 = vadd.f32 %v927, %v943
    %v948 = vtanh.pop %v946
    %v949 = vtanh.pop %v947
    %952 = vrot.lane.b32.xlu0 %v948, 64
    %v953 = vpop.permute.xlu0 %952
    %954 = vrot.lane.b32.xlu0 %v949, 64
    %v955 = vpop.permute.xlu0 %954
    %v958 = vmul.f32 %v922, %v953
    %v959 = vmul.f32 %v923, %v955
    %962 = vrot.lane.b32.xlu0 %v958, 32
    %v963 = vpop.permute.xlu0 %962
    %964 = vrot.lane.b32.xlu0 %v959, 32
    %v965 = vpop.permute.xlu0 %964
    %968 = vst.msk [vmem:[#allocation3 + $0x5] sm:$0x1] %vm276, %v963
    %969 = vst.msk [vmem:[#allocation3 + $0xd] sm:$0x1] %vm276, %v965
    %v970 = vld [vmem:[#allocation2 + $0x6] sm:$0x1]
    %v971 = vld [vmem:[#allocation2 + $0xe] sm:$0x1]
    %v972 = vrot.slane %v959, 7
    %v973 = vsel %vm282, %v972, %v958
    %974 = vrot.lane.b32.xlu0 %v973, 32
    %v975 = vpop.permute.xlu0 %974
    %v976 = vsel %vm144, %v975, 0
    %978 = vmatprep.subr.mxu0 0.0
    %979 = vmatpush1.msra.mxu0 %v138
    %980 = vmatprep.subr.mxu0 0.0
    %981 = vmatpush1.msra.mxu0 %v139
    %982 = vmatprep.subr.mxu0 0.0
    %983 = vmatpush1.msra.mxu0 %v140
    %984 = vmatprep.subr.mxu0 0.0
    %985 = vmatpush1.msra.mxu0 %v141
    %986 = vmatprep.subr.mxu0 0.0
    %987 = vmatpush1.msra.mxu0 0.0
    %988 = vmatprep.subr.mxu0 0.0
    %989 = vmatpush1.msra.mxu0 0.0
    %990 = vmatprep.subr.mxu0 0.0
    %991 = vmatpush1.msra.mxu0 0.0
    %992 = vmatprep.subr.mxu0 0.0
    %993 = vmatpush1.msra.mxu0 0.0
    %994 = vmatprep.subr.mxu0 0.0
    %995 = vmatpush1.msra.mxu0 0.0
    %996 = vmatprep.subr.mxu0 0.0
    %997 = vmatpush1.msra.mxu0 0.0
    %998 = vmatprep.subr.mxu0 0.0
    %999 = vmatpush1.msra.mxu0 0.0
    %1000 = vmatprep.subr.mxu0 0.0
    %1001 = vmatpush1.msra.mxu0 0.0
    %1002 = vmatprep.subr.mxu0 0.0
    %1003 = vmatpush1.msra.mxu0 0.0
    %1004 = vmatprep.subr.mxu0 0.0
    %1005 = vmatpush1.msra.mxu0 0.0
    %1006 = vmatprep.subr.mxu0 0.0
    %1007 = vmatpush1.msra.mxu0 0.0
    %1008 = vmatprep.subr.mxu0 0.0
    %1009 = vmatpush1.msra.mxu0 0.0
    %1010 = vmatprep.subr.mxu0 0.0
    %1011 = vmatpush1.msra.mxu0 0.0
    %1012 = vmatprep.subr.mxu0 0.0
    %1013 = vmatpush1.msra.mxu0 0.0
    %1014 = vmatprep.subr.mxu0 0.0
    %1015 = vmatpush1.msra.mxu0 0.0
    %1016 = vmatprep.subr.mxu0 0.0
    %1017 = vmatpush1.msra.mxu0 0.0
    %1018 = vmatprep.subr.mxu0 0.0
    %1019 = vmatpush1.msra.mxu0 0.0
    %1020 = vmatprep.subr.mxu0 0.0
    %1021 = vmatpush1.msra.mxu0 0.0
    %1022 = vmatprep.subr.mxu0 0.0
    %1023 = vmatpush1.msra.mxu0 0.0
    %1024 = vmatprep.subr.mxu0 0.0
    %1025 = vmatpush1.msra.mxu0 0.0
    %1026 = vmatprep.subr.mxu0 0.0
    %1027 = vmatpush1.msra.mxu0 0.0
    %1028 = vmatprep.subr.mxu0 0.0
    %1029 = vmatpush1.msra.mxu0 0.0
    %1030 = vmatprep.subr.mxu0 0.0
    %1031 = vmatpush1.msra.mxu0 0.0
    %1032 = vmatprep.subr.mxu0 0.0
    %1033 = vmatpush1.msra.mxu0 0.0
    %1034 = vmatprep.subr.mxu0 0.0
    %1035 = vmatpush1.msra.mxu0 0.0
    %1036 = vmatprep.subr.mxu0 0.0
    %1037 = vmatpush1.msra.mxu0 0.0
    %1038 = vmatprep.subr.mxu0 0.0
    %1039 = vmatpush1.msra.mxu0 0.0
    %1040 = vmatprep.subr.mxu0 0.0
    %1041 = vmatpush1.msra.mxu0 0.0
    %1042 = vmatprep.mubr.f32.mxu0 0.0
    %1043 = vmatmul.mubr.f32.gmra.mrb[0].mxu0 %v976
    %v1044 = vpop.f32.mrb[0].mxu0
    %v1045 = vadd.f32 0.0, %v1044
    %v1046 = vpop.f32.mrb[0].mxu0
    %1047 = vdwg.mxu0
    %v1049 = vrot.slane %v1045, 1
    %v1052 = vadd.f32 %v970, %v1045
    %v1053 = vadd.f32 %v971, %v1049
    %v1054 = vmul.f32 %v1052, 0.5
    %v1055 = vmul.f32 %v1053, 0.5
    %v1056 = vtanh.pop %v1054
    %v1057 = vtanh.pop %v1055
    %v1058 = vmul.f32 %v1056, 0.5
    %v1059 = vmul.f32 %v1057, 0.5
    %v1060 = vadd.f32 %v1058, 0.5
    %v1061 = vadd.f32 %v1059, 0.5
    %v1062 = vtanh.pop %v1052
    %v1063 = vtanh.pop %v1053
    %v1064 = vmul.f32 %v1060, %v946
    %v1065 = vmul.f32 %v1061, %v947
    %1068 = vrot.lane.b32.xlu0 %v1062, 64
    %v1069 = vpop.permute.xlu0 %1068
    %1070 = vrot.lane.b32.xlu0 %v1063, 64
    %v1071 = vpop.permute.xlu0 %1070
    %v1074 = vmul.f32 %v1060, %v1069
    %v1075 = vmul.f32 %v1061, %v1071
    %1078 = vrot.lane.b32.xlu0 %v1074, 32
    %v1079 = vpop.permute.xlu0 %1078
    %1080 = vrot.lane.b32.xlu0 %v1075, 32
    %v1081 = vpop.permute.xlu0 %1080
    %v1084 = vadd.f32 %v1064, %v1079
    %v1085 = vadd.f32 %v1065, %v1081
    %v1086 = vtanh.pop %v1084
    %v1087 = vtanh.pop %v1085
    %1090 = vrot.lane.b32.xlu0 %v1086, 64
    %v1091 = vpop.permute.xlu0 %1090
    %1092 = vrot.lane.b32.xlu0 %v1087, 64
    %v1093 = vpop.permute.xlu0 %1092
    %v1096 = vmul.f32 %v1060, %v1091
    %v1097 = vmul.f32 %v1061, %v1093
    %1100 = vrot.lane.b32.xlu0 %v1096, 32
    %v1101 = vpop.permute.xlu0 %1100
    %1102 = vrot.lane.b32.xlu0 %v1097, 32
    %v1103 = vpop.permute.xlu0 %1102
    %1106 = vst.msk [vmem:[#allocation3 + $0x6] sm:$0x1] %vm276, %v1101
    %1107 = vst.msk [vmem:[#allocation3 + $0xe] sm:$0x1] %vm276, %v1103
    %v1108 = vld [vmem:[#allocation2 + $0x7] sm:$0x1]
    %v1109 = vld [vmem:[#allocation2 + $0xf] sm:$0x1]
    %v1110 = vrot.slane %v1097, 7
    %v1111 = vsel %vm282, %v1110, %v1096
    %1112 = vrot.lane.b32.xlu0 %v1111, 32
    %v1113 = vpop.permute.xlu0 %1112
    %v1114 = vsel %vm144, %v1113, 0
    %1116 = vmatprep.subr.mxu0 0.0
    %1117 = vmatpush1.msra.mxu0 %v138
    %1118 = vmatprep.subr.mxu0 0.0
    %1119 = vmatpush1.msra.mxu0 %v139
    %1120 = vmatprep.subr.mxu0 0.0
    %1121 = vmatpush1.msra.mxu0 %v140
    %1122 = vmatprep.subr.mxu0 0.0
    %1123 = vmatpush1.msra.mxu0 %v141
    %1124 = vmatprep.subr.mxu0 0.0
    %1125 = vmatpush1.msra.mxu0 0.0
    %1126 = vmatprep.subr.mxu0 0.0
    %1127 = vmatpush1.msra.mxu0 0.0
    %1128 = vmatprep.subr.mxu0 0.0
    %1129 = vmatpush1.msra.mxu0 0.0
    %1130 = vmatprep.subr.mxu0 0.0
    %1131 = vmatpush1.msra.mxu0 0.0
    %1132 = vmatprep.subr.mxu0 0.0
    %1133 = vmatpush1.msra.mxu0 0.0
    %1134 = vmatprep.subr.mxu0 0.0
    %1135 = vmatpush1.msra.mxu0 0.0
    %1136 = vmatprep.subr.mxu0 0.0
    %1137 = vmatpush1.msra.mxu0 0.0
    %1138 = vmatprep.subr.mxu0 0.0
    %1139 = vmatpush1.msra.mxu0 0.0
    %1140 = vmatprep.subr.mxu0 0.0
    %1141 = vmatpush1.msra.mxu0 0.0
    %1142 = vmatprep.subr.mxu0 0.0
    %1143 = vmatpush1.msra.mxu0 0.0
    %1144 = vmatprep.subr.mxu0 0.0
    %1145 = vmatpush1.msra.mxu0 0.0
    %1146 = vmatprep.subr.mxu0 0.0
    %1147 = vmatpush1.msra.mxu0 0.0
    %1148 = vmatprep.subr.mxu0 0.0
    %1149 = vmatpush1.msra.mxu0 0.0
    %1150 = vmatprep.subr.mxu0 0.0
    %1151 = vmatpush1.msra.mxu0 0.0
    %1152 = vmatprep.subr.mxu0 0.0
    %1153 = vmatpush1.msra.mxu0 0.0
    %1154 = vmatprep.subr.mxu0 0.0
    %1155 = vmatpush1.msra.mxu0 0.0
    %1156 = vmatprep.subr.mxu0 0.0
    %1157 = vmatpush1.msra.mxu0 0.0
    %1158 = vmatprep.subr.mxu0 0.0
    %1159 = vmatpush1.msra.mxu0 0.0
    %1160 = vmatprep.subr.mxu0 0.0
    %1161 = vmatpush1.msra.mxu0 0.0
    %1162 = vmatprep.subr.mxu0 0.0
    %1163 = vmatpush1.msra.mxu0 0.0
    %1164 = vmatprep.subr.mxu0 0.0
    %1165 = vmatpush1.msra.mxu0 0.0
    %1166 = vmatprep.subr.mxu0 0.0
    %1167 = vmatpush1.msra.mxu0 0.0
    %1168 = vmatprep.subr.mxu0 0.0
    %1169 = vmatpush1.msra.mxu0 0.0
    %1170 = vmatprep.subr.mxu0 0.0
    %1171 = vmatpush1.msra.mxu0 0.0
    %1172 = vmatprep.subr.mxu0 0.0
    %1173 = vmatpush1.msra.mxu0 0.0
    %1174 = vmatprep.subr.mxu0 0.0
    %1175 = vmatpush1.msra.mxu0 0.0
    %1176 = vmatprep.subr.mxu0 0.0
    %1177 = vmatpush1.msra.mxu0 0.0
    %1178 = vmatprep.subr.mxu0 0.0
    %1179 = vmatpush1.msra.mxu0 0.0
    %1180 = vmatprep.mubr.f32.mxu0 0.0
    %1181 = vmatmul.mubr.f32.gmra.mrb[0].mxu0 %v1114
    %v1182 = vpop.f32.mrb[0].mxu0
    %v1183 = vadd.f32 0.0, %v1182
    %v1184 = vpop.f32.mrb[0].mxu0
    %1185 = vdwg.mxu0
    %v1187 = vrot.slane %v1183, 1
    %v1190 = vadd.f32 %v1108, %v1183
    %v1191 = vadd.f32 %v1109, %v1187
    %v1192 = vmul.f32 %v1190, 0.5
    %v1193 = vmul.f32 %v1191, 0.5
    %v1194 = vtanh.pop %v1192
    %v1195 = vtanh.pop %v1193
    %v1196 = vmul.f32 %v1194, 0.5
    %v1197 = vmul.f32 %v1195, 0.5
    %v1198 = vadd.f32 %v1196, 0.5
    %v1199 = vadd.f32 %v1197, 0.5
    %v1200 = vtanh.pop %v1190
    %v1201 = vtanh.pop %v1191
    %v1202 = vmul.f32 %v1198, %v1084
    %v1203 = vmul.f32 %v1199, %v1085
    %1206 = vrot.lane.b32.xlu0 %v1200, 64
    %v1207 = vpop.permute.xlu0 %1206
    %1208 = vrot.lane.b32.xlu0 %v1201, 64
    %v1209 = vpop.permute.xlu0 %1208
    %v1212 = vmul.f32 %v1198, %v1207
    %v1213 = vmul.f32 %v1199, %v1209
    %1216 = vrot.lane.b32.xlu0 %v1212, 32
    %v1217 = vpop.permute.xlu0 %1216
    %1218 = vrot.lane.b32.xlu0 %v1213, 32
    %v1219 = vpop.permute.xlu0 %1218
    %v1222 = vadd.f32 %v1202, %v1217
    %v1223 = vadd.f32 %v1203, %v1219
    %v1224 = vtanh.pop %v1222
    %v1225 = vtanh.pop %v1223
    %1228 = vrot.lane.b32.xlu0 %v1224, 64
    %v1229 = vpop.permute.xlu0 %1228
    %1230 = vrot.lane.b32.xlu0 %v1225, 64
    %v1231 = vpop.permute.xlu0 %1230
    %v1234 = vmul.f32 %v1198, %v1229
    %v1235 = vmul.f32 %v1199, %v1231
    %1238 = vrot.lane.b32.xlu0 %v1234, 32
    %v1239 = vpop.permute.xlu0 %1238
    %1240 = vrot.lane.b32.xlu0 %v1235, 32
    %v1241 = vpop.permute.xlu0 %1240
    %1244 = vst.msk [vmem:[#allocation3 + $0x7] sm:$0x1] %vm276, %v1239
    %1245 = vst.msk [vmem:[#allocation3 + $0xf] sm:$0x1] %vm276, %v1241
    %v1246 = vld [vmem:[#allocation3] sm:$0xff]
    %v1247 = vld [vmem:[#allocation3 + $0x8] sm:$0xff]
    %v1248 = vld [vmem:[#allocation4] sm:$0xff]
    %v1249 = vld [vmem:[#allocation4 + $0x8] sm:$0xff]
    %v1250 = vld [vmem:[#allocation4 + $0x10] sm:$0xff]
    %v1251 = vld [vmem:[#allocation4 + $0x18] sm:$0xff]
    %v1252 = vld [vmem:[%s5] sm:$0x1]
    %v1254 = vlaneseq
    %v1255 = vshrl.u32 %v1254, 7
    %v1256 = vsub.s32 0, %v1255
    %v1257 = vrot.slane %v1252, %v1256
    %v1260 = vsel %vm144, %v1246, 0
    %v1263 = vsel %vm144, %v1247, 0
    %1265 = vmatprep.subr.mxu0 0.0
    %1266 = vmatpush1.msra.mxu0 %v1248
    %1267 = vmatprep.subr.mxu0 0.0
    %1268 = vmatpush1.msra.mxu0 %v1249
    %1269 = vmatprep.subr.mxu0 0.0
    %1270 = vmatpush1.msra.mxu0 %v1250
    %1271 = vmatprep.subr.mxu0 0.0
    %1272 = vmatpush1.msra.mxu0 %v1251
    %1273 = vmatprep.subr.mxu0 0.0
    %1274 = vmatpush1.msra.mxu0 0.0
    %1275 = vmatprep.subr.mxu0 0.0
    %1276 = vmatpush1.msra.mxu0 0.0
    %1277 = vmatprep.subr.mxu0 0.0
    %1278 = vmatpush1.msra.mxu0 0.0
    %1279 = vmatprep.subr.mxu0 0.0
    %1280 = vmatpush1.msra.mxu0 0.0
    %1281 = vmatprep.subr.mxu0 0.0
    %1282 = vmatpush1.msra.mxu0 0.0
    %1283 = vmatprep.subr.mxu0 0.0
    %1284 = vmatpush1.msra.mxu0 0.0
    %1285 = vmatprep.subr.mxu0 0.0
    %1286 = vmatpush1.msra.mxu0 0.0
    %1287 = vmatprep.subr.mxu0 0.0
    %1288 = vmatpush1.msra.mxu0 0.0
    %1289 = vmatprep.subr.mxu0 0.0
    %1290 = vmatpush1.msra.mxu0 0.0
    %1291 = vmatprep.subr.mxu0 0.0
    %1292 = vmatpush1.msra.mxu0 0.0
    %1293 = vmatprep.subr.mxu0 0.0
    %1294 = vmatpush1.msra.mxu0 0.0
    %1295 = vmatprep.subr.mxu0 0.0
    %1296 = vmatpush1.msra.mxu0 0.0
    %1297 = vmatprep.subr.mxu0 0.0
    %1298 = vmatpush1.msra.mxu0 0.0
    %1299 = vmatprep.subr.mxu0 0.0
    %1300 = vmatpush1.msra.mxu0 0.0
    %1301 = vmatprep.subr.mxu0 0.0
    %1302 = vmatpush1.msra.mxu0 0.0
    %1303 = vmatprep.subr.mxu0 0.0
    %1304 = vmatpush1.msra.mxu0 0.0
    %1305 = vmatprep.subr.mxu0 0.0
    %1306 = vmatpush1.msra.mxu0 0.0
    %1307 = vmatprep.subr.mxu0 0.0
    %1308 = vmatpush1.msra.mxu0 0.0
    %1309 = vmatprep.subr.mxu0 0.0
    %1310 = vmatpush1.msra.mxu0 0.0
    %1311 = vmatprep.subr.mxu0 0.0
    %1312 = vmatpush1.msra.mxu0 0.0
    %1313 = vmatprep.subr.mxu0 0.0
    %1314 = vmatpush1.msra.mxu0 0.0
    %1315 = vmatprep.subr.mxu0 0.0
    %1316 = vmatpush1.msra.mxu0 0.0
    %1317 = vmatprep.subr.mxu0 0.0
    %1318 = vmatpush1.msra.mxu0 0.0
    %1319 = vmatprep.subr.mxu0 0.0
    %1320 = vmatpush1.msra.mxu0 0.0
    %1321 = vmatprep.subr.mxu0 0.0
    %1322 = vmatpush1.msra.mxu0 0.0
    %1323 = vmatprep.subr.mxu0 0.0
    %1324 = vmatpush1.msra.mxu0 0.0
    %1325 = vmatprep.subr.mxu0 0.0
    %1326 = vmatpush1.msra.mxu0 0.0
    %1327 = vmatprep.subr.mxu0 0.0
    %1328 = vmatpush1.msra.mxu0 0.0
    %1329 = vmatprep.mubr.f32.mxu0 0.0
    %1330 = vmatmul.mubr.f32.gmra.mrb[0].mxu0 %v1260
    %v1331 = vpop.f32.mrb[0].mxu0
    %v1332 = vadd.f32 %v1257, %v1331
    %v1333 = vpop.f32.mrb[0].mxu0
    %1334 = vmatprep.mubr.f32.mxu0 0.0
    %1335 = vmatmul.mubr.f32.gmra.mrb[0].mxu0 %v1263
    %v1336 = vpop.f32.mrb[0].mxu0
    %v1337 = vadd.f32 %v1257, %v1336
    %v1338 = vpop.f32.mrb[0].mxu0
    %1339 = vdwg.mxu0
    %v1340 = vld [vmem:[%s6] sm:$0xf]
    %v1341 = vld [vmem:[%s6 + $0x4] sm:$0xf]
    %vm1342 = vcmask 64512
    %v1344 = vsel %vm1342, %v1340, 0
    %1346 = vmatprep.subr.mxu0 0.0
    %1347 = vmatpush1.msra.mxu0 %v1332
    %1348 = vmatprep.subr.mxu0 0.0
    %1349 = vmatpush1.msra.mxu0 0.0
    %1350 = vmatprep.subr.mxu0 0.0
    %1351 = vmatpush1.msra.mxu0 0.0
    %1352 = vmatprep.subr.mxu0 0.0
    %1353 = vmatpush1.msra.mxu0 0.0
    %1354 = vmatprep.subr.mxu0 0.0
    %1355 = vmatpush1.msra.mxu0 0.0
    %1356 = vmatprep.subr.mxu0 0.0
    %1357 = vmatpush1.msra.mxu0 0.0
    %1358 = vmatprep.subr.mxu0 0.0
    %1359 = vmatpush1.msra.mxu0 0.0
    %1360 = vmatprep.subr.mxu0 0.0
    %1361 = vmatpush1.msra.mxu0 0.0
    %1362 = vmatprep.subr.mxu0 0.0
    %1363 = vmatpush1.msra.mxu0 0.0
    %1364 = vmatprep.subr.mxu0 0.0
    %1365 = vmatpush1.msra.mxu0 0.0
    %1366 = vmatprep.subr.mxu0 0.0
    %1367 = vmatpush1.msra.mxu0 0.0
    %1368 = vmatprep.subr.mxu0 0.0
    %1369 = vmatpush1.msra.mxu0 0.0
    %1370 = vmatprep.subr.mxu0 0.0
    %1371 = vmatpush1.msra.mxu0 0.0
    %1372 = vmatprep.subr.mxu0 0.0
    %1373 = vmatpush1.msra.mxu0 0.0
    %1374 = vmatprep.subr.mxu0 0.0
    %1375 = vmatpush1.msra.mxu0 0.0
    %1376 = vmatprep.subr.mxu0 0.0
    %1377 = vmatpush1.msra.mxu0 0.0
    %1378 = vmatprep.subr.mxu0 0.0
    %1379 = vmatpush1.msra.mxu0 0.0
    %1380 = vmatprep.subr.mxu0 0.0
    %1381 = vmatpush1.msra.mxu0 0.0
    %1382 = vmatprep.subr.mxu0 0.0
    %1383 = vmatpush1.msra.mxu0 0.0
    %1384 = vmatprep.subr.mxu0 0.0
    %1385 = vmatpush1.msra.mxu0 0.0
    %1386 = vmatprep.subr.mxu0 0.0
    %1387 = vmatpush1.msra.mxu0 0.0
    %1388 = vmatprep.subr.mxu0 0.0
    %1389 = vmatpush1.msra.mxu0 0.0
    %1390 = vmatprep.subr.mxu0 0.0
    %1391 = vmatpush1.msra.mxu0 0.0
    %1392 = vmatprep.subr.mxu0 0.0
    %1393 = vmatpush1.msra.mxu0 0.0
    %1394 = vmatprep.subr.mxu0 0.0
    %1395 = vmatpush1.msra.mxu0 0.0
    %1396 = vmatprep.subr.mxu0 0.0
    %1397 = vmatpush1.msra.mxu0 0.0
    %1398 = vmatprep.subr.mxu0 0.0
    %1399 = vmatpush1.msra.mxu0 0.0
    %1400 = vmatprep.subr.mxu0 0.0
    %1401 = vmatpush1.msra.mxu0 0.0
    %1402 = vmatprep.subr.mxu0 0.0
    %1403 = vmatpush1.msra.mxu0 0.0
    %1404 = vmatprep.subr.mxu0 0.0
    %1405 = vmatpush1.msra.mxu0 0.0
    %1406 = vmatprep.subr.mxu0 0.0
    %1407 = vmatpush1.msra.mxu0 0.0
    %1408 = vmatprep.subr.mxu0 0.0
    %1409 = vmatpush1.msra.mxu0 0.0
    %1410 = vmatprep.mubr.f32.mxu0 0.0
    %1411 = vmatmul.mubr.f32.gmra.mrb[0].mxu0 %v1344
    %v1412 = vpop.f32.mrb[0].mxu0
    %v1413 = vadd.f32 0.0, %v1412
    %v1414 = vpop.f32.mrb[0].mxu0
    %1415 = vdwg.mxu0
    %v1417 = vsel %vm1342, %v1341, 0
    %1419 = vmatprep.subr.mxu0 0.0
    %1420 = vmatpush1.msra.mxu0 %v1337
    %1421 = vmatprep.subr.mxu0 0.0
    %1422 = vmatpush1.msra.mxu0 0.0
    %1423 = vmatprep.subr.mxu0 0.0
    %1424 = vmatpush1.msra.mxu0 0.0
    %1425 = vmatprep.subr.mxu0 0.0
    %1426 = vmatpush1.msra.mxu0 0.0
    %1427 = vmatprep.subr.mxu0 0.0
    %1428 = vmatpush1.msra.mxu0 0.0
    %1429 = vmatprep.subr.mxu0 0.0
    %1430 = vmatpush1.msra.mxu0 0.0
    %1431 = vmatprep.subr.mxu0 0.0
    %1432 = vmatpush1.msra.mxu0 0.0
    %1433 = vmatprep.subr.mxu0 0.0
    %1434 = vmatpush1.msra.mxu0 0.0
    %1435 = vmatprep.subr.mxu0 0.0
    %1436 = vmatpush1.msra.mxu0 0.0
    %1437 = vmatprep.subr.mxu0 0.0
    %1438 = vmatpush1.msra.mxu0 0.0
    %1439 = vmatprep.subr.mxu0 0.0
    %1440 = vmatpush1.msra.mxu0 0.0
    %1441 = vmatprep.subr.mxu0 0.0
    %1442 = vmatpush1.msra.mxu0 0.0
    %1443 = vmatprep.subr.mxu0 0.0
    %1444 = vmatpush1.msra.mxu0 0.0
    %1445 = vmatprep.subr.mxu0 0.0
    %1446 = vmatpush1.msra.mxu0 0.0
    %1447 = vmatprep.subr.mxu0 0.0
    %1448 = vmatpush1.msra.mxu0 0.0
    %1449 = vmatprep.subr.mxu0 0.0
    %1450 = vmatpush1.msra.mxu0 0.0
    %1451 = vmatprep.subr.mxu0 0.0
    %1452 = vmatpush1.msra.mxu0 0.0
    %1453 = vmatprep.subr.mxu0 0.0
    %1454 = vmatpush1.msra.mxu0 0.0
    %1455 = vmatprep.subr.mxu0 0.0
    %1456 = vmatpush1.msra.mxu0 0.0
    %1457 = vmatprep.subr.mxu0 0.0
    %1458 = vmatpush1.msra.mxu0 0.0
    %1459 = vmatprep.subr.mxu0 0.0
    %1460 = vmatpush1.msra.mxu0 0.0
    %1461 = vmatprep.subr.mxu0 0.0
    %1462 = vmatpush1.msra.mxu0 0.0
    %1463 = vmatprep.subr.mxu0 0.0
    %1464 = vmatpush1.msra.mxu0 0.0
    %1465 = vmatprep.subr.mxu0 0.0
    %1466 = vmatpush1.msra.mxu0 0.0
    %1467 = vmatprep.subr.mxu0 0.0
    %1468 = vmatpush1.msra.mxu0 0.0
    %1469 = vmatprep.subr.mxu0 0.0
    %1470 = vmatpush1.msra.mxu0 0.0
    %1471 = vmatprep.subr.mxu0 0.0
    %1472 = vmatpush1.msra.mxu0 0.0
    %1473 = vmatprep.subr.mxu0 0.0
    %1474 = vmatpush1.msra.mxu0 0.0
    %1475 = vmatprep.subr.mxu0 0.0
    %1476 = vmatpush1.msra.mxu0 0.0
    %1477 = vmatprep.subr.mxu0 0.0
    %1478 = vmatpush1.msra.mxu0 0.0
    %1479 = vmatprep.subr.mxu0 0.0
    %1480 = vmatpush1.msra.mxu0 0.0
    %1481 = vmatprep.subr.mxu0 0.0
    %1482 = vmatpush1.msra.mxu0 0.0
    %1483 = vmatprep.mubr.f32.mxu0 0.0
    %1484 = vmatmul.mubr.f32.gmra.mrb[0].mxu0 %v1417
    %v1485 = vpop.f32.mrb[0].mxu0
    %v1486 = vadd.f32 0.0, %v1485
    %v1487 = vpop.f32.mrb[0].mxu0
    %1488 = vdwg.mxu0
    %1489 = vst [vmem:[%s7] sm:$0xf] %v1413
    %1490 = vst [vmem:[%s7 + $0x4] sm:$0xf] %v1486
    // Predicated region
    $region34: #{tracklet_forward.1} parent=1 // pred_check
      _
    $region35: #{tracklet_forward.1} parent=1 // pred_check_branch
      %1492 = sbr.rel (0) target = $region37
    $region36: #{tracklet_forward.1} parent=1 // pred_region
      _
    $region37: #{tracklet_forward.1} parent=1 // pred_fallthru
      _
    // Predicated region
    $region38: #{tracklet_forward.1} parent=1 // pred_check
      _
    $region39: #{tracklet_forward.1} parent=1 // pred_check_branch
      %1494 = sbr.rel (0) target = $region41
    $region40: #{tracklet_forward.1} parent=1 // pred_region
      _
    $region41: #{tracklet_forward.1} parent=1 // pred_fallthru
      _
    %1495 = vsyncpa [#allocation5], 1

</llo_original>
